<compile_context>
chip_gen: v7x
topology: tpu7x:2x2x1
jax: 0.10.0
libtpu: 0.0.40
codegen_flags: <defaults>
</compile_context>

<pallas_src>
import jax
import jax.numpy as jnp
import numpy as np
from jax import lax
from jax.experimental import pallas as pl
from jax.experimental.pallas import tpu as pltpu


def lstm_predictor_kernel(x_ref,                        # (T*B, D) time-major, flattened
                          wih0_ref, whh0_ref, b0_ref,   # (D,4H), (H,4H), (1,4H)
                          w1_ref, b1_ref,               # (2H,4H)=[wih1;whh1], (1,4H)
                          wd_ref, bd_ref,               # (1,H), (1,1)
                          out_ref,                      # (B,1)
                          xg_ref):                      # scratch (T, B, 4H)
    T, B, G = xg_ref.shape           # G = 4*H
    H = whh0_ref.shape[0]

    whh0 = whh0_ref[...]
    w1 = w1_ref[...]
    # Hoist the bias broadcast out of the unrolled loop.
    b1 = jnp.broadcast_to(b1_ref[...], (B, G))

    # --- Hoisted layer-0 input projection (no sequential dependence) --------
    # One (T*B, D) x (D, 4H) matmul with b0 folded in, stored time-major so
    # the per-step read xg_ref[t] is a contiguous (B, 4H) slab.
    xg_ref[...] = (jnp.dot(x_ref[...], wih0_ref[...],
                           preferred_element_type=jnp.float32)
                   + b0_ref[...]).reshape(T, B, G)

    def activate(gates):
        # Full-vreg (B, 4H = 128) activations, then 32-lane [i,f,g,o] slices.
        sig = 1.0 / (1.0 + jnp.exp(-gates))      # EUP exp + reciprocal
        th = jnp.tanh(gates)
        i = sig[:, 0 * H:1 * H]
        f = sig[:, 1 * H:2 * H]
        g = th[:, 2 * H:3 * H]
        o = sig[:, 3 * H:4 * H]
        return i, f, g, o

    def step(t, carry):
        h1, c1, h2, c2 = carry

        # Layer 0: only the recurrent matmul stays on the serial chain.
        g0 = xg_ref[t] + jnp.dot(h1, whh0, preferred_element_type=jnp.float32)
        i0, f0, gg0, o0 = activate(g0)
        c1 = f0 * c1 + i0 * gg0
        h1 = o0 * jnp.tanh(c1)

        # Layer 1: fused input+recurrent matmul via concatenated operands.
        g1 = jnp.dot(jnp.concatenate([h1, h2], axis=1), w1,
                     preferred_element_type=jnp.float32) + b1
        i1, f1, gg1, o1 = activate(g1)
        c2 = f1 * c2 + i1 * gg1
        h2 = o1 * jnp.tanh(c2)

        return h1, c1, h2, c2

    zeros = jnp.zeros((B, H), dtype=jnp.float32)
    _, _, h2, _ = lax.fori_loop(0, T, step, (zeros, zeros, zeros, zeros),
                                unroll=True)

    # TODO(synk): nn.Dropout is stochastic in train mode; eval-mode (identity)
    # semantics are implemented here.
    # Final dense: VPU multiply + lane reduction (avoids a 1-column MXU pass).
    out_ref[...] = (jnp.sum(h2 * wd_ref[...], axis=-1, keepdims=True)
                    + bd_ref[...])


def lstm_predictor_forward(x, params):
    """x: (B, T, D) batch-first, float32. Returns (B, 1) float32."""
    B, T, D = x.shape
    H = params["whh0"].shape[0]

    # Time-major + flattened for the hoisted layer-0 projection.
    x_tm = jnp.transpose(x, (1, 0, 2)).reshape(T * B, D)                # (T*B,D)
    w1 = jnp.concatenate([params["wih1"], params["whh1"]], axis=0)      # (2H,4H)
    wd_row = params["wd"].T                                             # (1,H)

    operands = (
        x_tm,
        params["wih0"], params["whh0"], params["b0"],
        w1, params["b1"],
        wd_row, params["bd"],
    )

    vmem_spec = pl.BlockSpec(memory_space=pltpu.MemorySpace.VMEM)
    return pl.pallas_call(
        lstm_predictor_kernel,
        out_shape=jax.ShapeDtypeStruct((B, 1), jnp.float32),
        in_specs=[vmem_spec] * len(operands),
        out_specs=vmem_spec,
        scratch_shapes=[pltpu.VMEM((T, B, 4 * H), jnp.float32)],
    )(*operands)


def init_params(key, input_dim, hidden_dim):
    """Deterministic params, PyTorch-style U(-1/sqrt(H), 1/sqrt(H)) init.

    Stored pre-transposed for right-multiplication:
      wih0: (D, 4H), whh0: (H, 4H), b0: (1, 4H)  [b_ih + b_hh combined]
      wih1/whh1/b1: layer-1 equivalents (input size = H)
      wd: (H, 1), bd: (1, 1)
    """
    H = hidden_dim
    k = 1.0 / np.sqrt(H)
    keys = jax.random.split(key, 10)

    def u(kk, shape):
        return jax.random.uniform(kk, shape, jnp.float32, -k, k)

    return {
        "wih0": u(keys[0], (input_dim, 4 * H)),
        "whh0": u(keys[1], (H, 4 * H)),
        "b0":   (u(keys[2], (1, 4 * H)) + u(keys[3], (1, 4 * H))),
        "wih1": u(keys[4], (H, 4 * H)),
        "whh1": u(keys[5], (H, 4 * H)),
        "b1":   (u(keys[6], (1, 4 * H)) + u(keys[7], (1, 4 * H))),
        "wd":   u(keys[8], (H, 1)),
        "bd":   u(keys[9], (1, 1)),
    }


def reference_forward_np(x, params):
    """NumPy f32 reference matching nn.LSTM(batch_first)+Linear in eval mode."""
    x = np.asarray(x, np.float32)
    p = {k: np.asarray(v, np.float32) for k, v in params.items()}
    B, T, D = x.shape
    H = p["whh0"].shape[0]

    def sigmoid(z):
        return 1.0 / (1.0 + np.exp(-z))

    def cell(x_t, h, c, wih, whh, b):
        g = x_t @ wih + h @ whh + b
        i = sigmoid(g[:, 0 * H:1 * H])
        f = sigmoid(g[:, 1 * H:2 * H])
        gg = np.tanh(g[:, 2 * H:3 * H])
        o = sigmoid(g[:, 3 * H:4 * H])
        c = f * c + i * gg
        h = o * np.tanh(c)
        return h, c

    h1 = c1 = h2 = c2 = np.zeros((B, H), np.float32)
    for t in range(T):
        h1, c1 = cell(x[:, t, :], h1, c1, p["wih0"], p["whh0"], p["b0"])
        h2, c2 = cell(h1, h2, c2, p["wih1"], p["whh1"], p["b1"])
    return h2 @ p["wd"] + p["bd"]


if __name__ == "__main__":
    B, T, D, H = 8, 8, 8, 32   # batch, seq_len, input_dim, hidden_dim

    key = jax.random.PRNGKey(0)
    k_x, k_p = jax.random.split(key)
    x = jax.random.normal(k_x, (B, T, D), dtype=jnp.float32)
    params = init_params(k_p, D, H)

    out = jax.jit(lstm_predictor_forward)(x, params)
    out = jax.block_until_ready(out)

    ref = reference_forward_np(x, params)
    assert out.shape == (B, 1), out.shape
    np.testing.assert_allclose(np.asarray(out), ref, rtol=1e-4, atol=1e-4)

    print("KERNEL_OK")
</pallas_src>

<mosaic_0001>
module attributes {stable_mosaic.version = 11 : i64} {
  func.func @lstm_predictor_kernel(%arg0: memref<64x8xf32, #tpu.memory_space<vmem>>, %arg1: memref<8x128xf32, #tpu.memory_space<vmem>>, %arg2: memref<32x128xf32, #tpu.memory_space<vmem>>, %arg3: memref<1x128xf32, #tpu.memory_space<vmem>>, %arg4: memref<64x128xf32, #tpu.memory_space<vmem>>, %arg5: memref<1x128xf32, #tpu.memory_space<vmem>>, %arg6: memref<1x32xf32, #tpu.memory_space<vmem>>, %arg7: memref<1x1xf32, #tpu.memory_space<vmem>>, %arg8: memref<8x1xf32, #tpu.memory_space<vmem>>, %arg9: memref<8x8x128xf32, #tpu.memory_space<vmem>>) attributes {dimension_semantics = [], scalar_prefetch = 0 : i64, scratch_operands = 1 : i64, tpu.core_type = #tpu.core_type<tc>} {
    %c0 = arith.constant 0 : index
    %c0_0 = arith.constant 0 : index
    %0 = vector.load %arg2[%c0, %c0_0] : memref<32x128xf32, #tpu.memory_space<vmem>>, vector<32x128xf32>
    %c0_1 = arith.constant 0 : index
    %c0_2 = arith.constant 0 : index
    %1 = vector.load %arg4[%c0_1, %c0_2] : memref<64x128xf32, #tpu.memory_space<vmem>>, vector<64x128xf32>
    %c0_3 = arith.constant 0 : index
    %c0_4 = arith.constant 0 : index
    %2 = vector.load %arg5[%c0_3, %c0_4] : memref<1x128xf32, #tpu.memory_space<vmem>>, vector<1x128xf32>
    %3 = vector.shape_cast %2 : vector<1x128xf32> to vector<1x128xf32>
    %4 = vector.broadcast %3 : vector<1x128xf32> to vector<8x128xf32>
    %c0_5 = arith.constant 0 : index
    %c0_6 = arith.constant 0 : index
    %5 = vector.load %arg0[%c0_5, %c0_6] : memref<64x8xf32, #tpu.memory_space<vmem>>, vector<64x8xf32>
    %c0_7 = arith.constant 0 : index
    %c0_8 = arith.constant 0 : index
    %6 = vector.load %arg1[%c0_7, %c0_8] : memref<8x128xf32, #tpu.memory_space<vmem>>, vector<8x128xf32>
    %cst = arith.constant dense<0.000000e+00> : vector<64x128xf32>
    %7 = tpu.matmul %5, %6, %cst {dimension_numbers = #tpu.dot_dimension_numbers<[1], [0], [0], [1], [0, 0, 1, 1], [], []>} : vector<64x8xf32>, vector<8x128xf32>, vector<64x128xf32> -> vector<64x128xf32>
    %c0_9 = arith.constant 0 : index
    %c0_10 = arith.constant 0 : index
    %8 = vector.load %arg3[%c0_9, %c0_10] : memref<1x128xf32, #tpu.memory_space<vmem>>, vector<1x128xf32>
    %9 = vector.broadcast %8 : vector<1x128xf32> to vector<64x128xf32>
    %10 = arith.addf %7, %9 : vector<64x128xf32>
    %11 = vector.shape_cast %10 : vector<64x128xf32> to vector<8x8x128xf32>
    %c0_11 = arith.constant 0 : index
    %c0_12 = arith.constant 0 : index
    %c0_13 = arith.constant 0 : index
    %12 = vector.load %arg9[%c0_11, %c0_12, %c0_13] : memref<8x8x128xf32, #tpu.memory_space<vmem>>, vector<8x8x128xf32>
    tpu.vector_store %arg9[%c0_11, %c0_12, %c0_13], %11 {strides = array<i32>} : memref<8x8x128xf32, #tpu.memory_space<vmem>>, vector<8x8x128xf32>,
    %cst_14 = arith.constant 0.000000e+00 : f32
    %13 = vector.broadcast %cst_14 : f32 to vector<8x32xf32>
    %c0_i32 = arith.constant 0 : i32
    %14 = arith.index_cast %c0_i32 : i32 to index
    %c0_15 = arith.constant 0 : index
    %c0_16 = arith.constant 0 : index
    %15 = vector.load %arg9[%14, %c0_15, %c0_16] : memref<8x8x128xf32, #tpu.memory_space<vmem>>, vector<1x8x128xf32>
    %16 = vector.shape_cast %15 : vector<1x8x128xf32> to vector<8x128xf32>
    %cst_17 = arith.constant dense<0.000000e+00> : vector<8x128xf32>
    %17 = tpu.matmul %13, %0, %cst_17 {dimension_numbers = #tpu.dot_dimension_numbers<[1], [0], [0], [1], [0, 0, 1, 1], [], []>} : vector<8x32xf32>, vector<32x128xf32>, vector<8x128xf32> -> vector<8x128xf32>
    %18 = arith.addf %16, %17 : vector<8x128xf32>
    %cst_18 = arith.constant 0.000000e+00 : f32
    %19 = vector.broadcast %cst_18 : f32 to vector<8x128xf32>
    %20 = arith.subf %19, %18 : vector<8x128xf32>
    %21 = math.exp %20 : vector<8x128xf32>
    %cst_19 = arith.constant 1.000000e+00 : f32
    %22 = vector.broadcast %cst_19 : f32 to vector<8x128xf32>
    %23 = arith.addf %22, %21 : vector<8x128xf32>
    %cst_20 = arith.constant 1.000000e+00 : f32
    %24 = vector.broadcast %cst_20 : f32 to vector<8x128xf32>
    %25 = arith.divf %24, %23 : vector<8x128xf32>
    %26 = math.tanh %18 : vector<8x128xf32>
    %27 = vector.extract_strided_slice %25 {offsets = [0, 0], sizes = [8, 32], strides = [1, 1]} : vector<8x128xf32> to vector<8x32xf32>
    %28 = vector.extract_strided_slice %25 {offsets = [0, 32], sizes = [8, 32], strides = [1, 1]} : vector<8x128xf32> to vector<8x32xf32>
    %29 = vector.extract_strided_slice %26 {offsets = [0, 64], sizes = [8, 32], strides = [1, 1]} : vector<8x128xf32> to vector<8x32xf32>
    %30 = vector.extract_strided_slice %25 {offsets = [0, 96], sizes = [8, 32], strides = [1, 1]} : vector<8x128xf32> to vector<8x32xf32>
    %31 = arith.mulf %28, %13 : vector<8x32xf32>
    %32 = arith.mulf %27, %29 : vector<8x32xf32>
    %33 = arith.addf %31, %32 : vector<8x32xf32>
    %34 = math.tanh %33 : vector<8x32xf32>
    %35 = arith.mulf %30, %34 : vector<8x32xf32>
    %36 = tpu.concatenate %35, %13 in 1 : vector<8x32xf32>, vector<8x32xf32> -> vector<8x64xf32>
    %cst_21 = arith.constant dense<0.000000e+00> : vector<8x128xf32>
    %37 = tpu.matmul %36, %1, %cst_21 {dimension_numbers = #tpu.dot_dimension_numbers<[1], [0], [0], [1], [0, 0, 1, 1], [], []>} : vector<8x64xf32>, vector<64x128xf32>, vector<8x128xf32> -> vector<8x128xf32>
    %38 = arith.addf %37, %4 : vector<8x128xf32>
    %cst_22 = arith.constant 0.000000e+00 : f32
    %39 = vector.broadcast %cst_22 : f32 to vector<8x128xf32>
    %40 = arith.subf %39, %38 : vector<8x128xf32>
    %41 = math.exp %40 : vector<8x128xf32>
    %cst_23 = arith.constant 1.000000e+00 : f32
    %42 = vector.broadcast %cst_23 : f32 to vector<8x128xf32>
    %43 = arith.addf %42, %41 : vector<8x128xf32>
    %cst_24 = arith.constant 1.000000e+00 : f32
    %44 = vector.broadcast %cst_24 : f32 to vector<8x128xf32>
    %45 = arith.divf %44, %43 : vector<8x128xf32>
    %46 = math.tanh %38 : vector<8x128xf32>
    %47 = vector.extract_strided_slice %45 {offsets = [0, 0], sizes = [8, 32], strides = [1, 1]} : vector<8x128xf32> to vector<8x32xf32>
    %48 = vector.extract_strided_slice %45 {offsets = [0, 32], sizes = [8, 32], strides = [1, 1]} : vector<8x128xf32> to vector<8x32xf32>
    %49 = vector.extract_strided_slice %46 {offsets = [0, 64], sizes = [8, 32], strides = [1, 1]} : vector<8x128xf32> to vector<8x32xf32>
    %50 = vector.extract_strided_slice %45 {offsets = [0, 96], sizes = [8, 32], strides = [1, 1]} : vector<8x128xf32> to vector<8x32xf32>
    %51 = arith.mulf %48, %13 : vector<8x32xf32>
    %52 = arith.mulf %47, %49 : vector<8x32xf32>
    %53 = arith.addf %51, %52 : vector<8x32xf32>
    %54 = math.tanh %53 : vector<8x32xf32>
    %55 = arith.mulf %50, %54 : vector<8x32xf32>
    %c1_i32 = arith.constant 1 : i32
    %56 = arith.index_cast %c1_i32 : i32 to index
    %c0_25 = arith.constant 0 : index
    %c0_26 = arith.constant 0 : index
    %57 = vector.load %arg9[%56, %c0_25, %c0_26] : memref<8x8x128xf32, #tpu.memory_space<vmem>>, vector<1x8x128xf32>
    %58 = vector.shape_cast %57 : vector<1x8x128xf32> to vector<8x128xf32>
    %cst_27 = arith.constant dense<0.000000e+00> : vector<8x128xf32>
    %59 = tpu.matmul %35, %0, %cst_27 {dimension_numbers = #tpu.dot_dimension_numbers<[1], [0], [0], [1], [0, 0, 1, 1], [], []>} : vector<8x32xf32>, vector<32x128xf32>, vector<8x128xf32> -> vector<8x128xf32>
    %60 = arith.addf %58, %59 : vector<8x128xf32>
    %cst_28 = arith.constant 0.000000e+00 : f32
    %61 = vector.broadcast %cst_28 : f32 to vector<8x128xf32>
    %62 = arith.subf %61, %60 : vector<8x128xf32>
    %63 = math.exp %62 : vector<8x128xf32>
    %cst_29 = arith.constant 1.000000e+00 : f32
    %64 = vector.broadcast %cst_29 : f32 to vector<8x128xf32>
    %65 = arith.addf %64, %63 : vector<8x128xf32>
    %cst_30 = arith.constant 1.000000e+00 : f32
    %66 = vector.broadcast %cst_30 : f32 to vector<8x128xf32>
    %67 = arith.divf %66, %65 : vector<8x128xf32>
    %68 = math.tanh %60 : vector<8x128xf32>
    %69 = vector.extract_strided_slice %67 {offsets = [0, 0], sizes = [8, 32], strides = [1, 1]} : vector<8x128xf32> to vector<8x32xf32>
    %70 = vector.extract_strided_slice %67 {offsets = [0, 32], sizes = [8, 32], strides = [1, 1]} : vector<8x128xf32> to vector<8x32xf32>
    %71 = vector.extract_strided_slice %68 {offsets = [0, 64], sizes = [8, 32], strides = [1, 1]} : vector<8x128xf32> to vector<8x32xf32>
    %72 = vector.extract_strided_slice %67 {offsets = [0, 96], sizes = [8, 32], strides = [1, 1]} : vector<8x128xf32> to vector<8x32xf32>
    %73 = arith.mulf %70, %33 : vector<8x32xf32>
    %74 = arith.mulf %69, %71 : vector<8x32xf32>
    %75 = arith.addf %73, %74 : vector<8x32xf32>
    %76 = math.tanh %75 : vector<8x32xf32>
    %77 = arith.mulf %72, %76 : vector<8x32xf32>
    %78 = tpu.concatenate %77, %55 in 1 : vector<8x32xf32>, vector<8x32xf32> -> vector<8x64xf32>
    %cst_31 = arith.constant dense<0.000000e+00> : vector<8x128xf32>
    %79 = tpu.matmul %78, %1, %cst_31 {dimension_numbers = #tpu.dot_dimension_numbers<[1], [0], [0], [1], [0, 0, 1, 1], [], []>} : vector<8x64xf32>, vector<64x128xf32>, vector<8x128xf32> -> vector<8x128xf32>
    %80 = arith.addf %79, %4 : vector<8x128xf32>
    %cst_32 = arith.constant 0.000000e+00 : f32
    %81 = vector.broadcast %cst_32 : f32 to vector<8x128xf32>
    %82 = arith.subf %81, %80 : vector<8x128xf32>
    %83 = math.exp %82 : vector<8x128xf32>
    %cst_33 = arith.constant 1.000000e+00 : f32
    %84 = vector.broadcast %cst_33 : f32 to vector<8x128xf32>
    %85 = arith.addf %84, %83 : vector<8x128xf32>
    %cst_34 = arith.constant 1.000000e+00 : f32
    %86 = vector.broadcast %cst_34 : f32 to vector<8x128xf32>
    %87 = arith.divf %86, %85 : vector<8x128xf32>
    %88 = math.tanh %80 : vector<8x128xf32>
    %89 = vector.extract_strided_slice %87 {offsets = [0, 0], sizes = [8, 32], strides = [1, 1]} : vector<8x128xf32> to vector<8x32xf32>
    %90 = vector.extract_strided_slice %87 {offsets = [0, 32], sizes = [8, 32], strides = [1, 1]} : vector<8x128xf32> to vector<8x32xf32>
    %91 = vector.extract_strided_slice %88 {offsets = [0, 64], sizes = [8, 32], strides = [1, 1]} : vector<8x128xf32> to vector<8x32xf32>
    %92 = vector.extract_strided_slice %87 {offsets = [0, 96], sizes = [8, 32], strides = [1, 1]} : vector<8x128xf32> to vector<8x32xf32>
    %93 = arith.mulf %90, %53 : vector<8x32xf32>
    %94 = arith.mulf %89, %91 : vector<8x32xf32>
    %95 = arith.addf %93, %94 : vector<8x32xf32>
    %96 = math.tanh %95 : vector<8x32xf32>
    %97 = arith.mulf %92, %96 : vector<8x32xf32>
    %c2_i32 = arith.constant 2 : i32
    %98 = arith.index_cast %c2_i32 : i32 to index
    %c0_35 = arith.constant 0 : index
    %c0_36 = arith.constant 0 : index
    %99 = vector.load %arg9[%98, %c0_35, %c0_36] : memref<8x8x128xf32, #tpu.memory_space<vmem>>, vector<1x8x128xf32>
    %100 = vector.shape_cast %99 : vector<1x8x128xf32> to vector<8x128xf32>
    %cst_37 = arith.constant dense<0.000000e+00> : vector<8x128xf32>
    %101 = tpu.matmul %77, %0, %cst_37 {dimension_numbers = #tpu.dot_dimension_numbers<[1], [0], [0], [1], [0, 0, 1, 1], [], []>} : vector<8x32xf32>, vector<32x128xf32>, vector<8x128xf32> -> vector<8x128xf32>
    %102 = arith.addf %100, %101 : vector<8x128xf32>
    %cst_38 = arith.constant 0.000000e+00 : f32
    %103 = vector.broadcast %cst_38 : f32 to vector<8x128xf32>
    %104 = arith.subf %103, %102 : vector<8x128xf32>
    %105 = math.exp %104 : vector<8x128xf32>
    %cst_39 = arith.constant 1.000000e+00 : f32
    %106 = vector.broadcast %cst_39 : f32 to vector<8x128xf32>
    %107 = arith.addf %106, %105 : vector<8x128xf32>
    %cst_40 = arith.constant 1.000000e+00 : f32
    %108 = vector.broadcast %cst_40 : f32 to vector<8x128xf32>
    %109 = arith.divf %108, %107 : vector<8x128xf32>
    %110 = math.tanh %102 : vector<8x128xf32>
    %111 = vector.extract_strided_slice %109 {offsets = [0, 0], sizes = [8, 32], strides = [1, 1]} : vector<8x128xf32> to vector<8x32xf32>
    %112 = vector.extract_strided_slice %109 {offsets = [0, 32], sizes = [8, 32], strides = [1, 1]} : vector<8x128xf32> to vector<8x32xf32>
    %113 = vector.extract_strided_slice %110 {offsets = [0, 64], sizes = [8, 32], strides = [1, 1]} : vector<8x128xf32> to vector<8x32xf32>
    %114 = vector.extract_strided_slice %109 {offsets = [0, 96], sizes = [8, 32], strides = [1, 1]} : vector<8x128xf32> to vector<8x32xf32>
    %115 = arith.mulf %112, %75 : vector<8x32xf32>
    %116 = arith.mulf %111, %113 : vector<8x32xf32>
    %117 = arith.addf %115, %116 : vector<8x32xf32>
    %118 = math.tanh %117 : vector<8x32xf32>
    %119 = arith.mulf %114, %118 : vector<8x32xf32>
    %120 = tpu.concatenate %119, %97 in 1 : vector<8x32xf32>, vector<8x32xf32> -> vector<8x64xf32>
    %cst_41 = arith.constant dense<0.000000e+00> : vector<8x128xf32>
    %121 = tpu.matmul %120, %1, %cst_41 {dimension_numbers = #tpu.dot_dimension_numbers<[1], [0], [0], [1], [0, 0, 1, 1], [], []>} : vector<8x64xf32>, vector<64x128xf32>, vector<8x128xf32> -> vector<8x128xf32>
    %122 = arith.addf %121, %4 : vector<8x128xf32>
    %cst_42 = arith.constant 0.000000e+00 : f32
    %123 = vector.broadcast %cst_42 : f32 to vector<8x128xf32>
    %124 = arith.subf %123, %122 : vector<8x128xf32>
    %125 = math.exp %124 : vector<8x128xf32>
    %cst_43 = arith.constant 1.000000e+00 : f32
    %126 = vector.broadcast %cst_43 : f32 to vector<8x128xf32>
    %127 = arith.addf %126, %125 : vector<8x128xf32>
    %cst_44 = arith.constant 1.000000e+00 : f32
    %128 = vector.broadcast %cst_44 : f32 to vector<8x128xf32>
    %129 = arith.divf %128, %127 : vector<8x128xf32>
    %130 = math.tanh %122 : vector<8x128xf32>
    %131 = vector.extract_strided_slice %129 {offsets = [0, 0], sizes = [8, 32], strides = [1, 1]} : vector<8x128xf32> to vector<8x32xf32>
    %132 = vector.extract_strided_slice %129 {offsets = [0, 32], sizes = [8, 32], strides = [1, 1]} : vector<8x128xf32> to vector<8x32xf32>
    %133 = vector.extract_strided_slice %130 {offsets = [0, 64], sizes = [8, 32], strides = [1, 1]} : vector<8x128xf32> to vector<8x32xf32>
    %134 = vector.extract_strided_slice %129 {offsets = [0, 96], sizes = [8, 32], strides = [1, 1]} : vector<8x128xf32> to vector<8x32xf32>
    %135 = arith.mulf %132, %95 : vector<8x32xf32>
    %136 = arith.mulf %131, %133 : vector<8x32xf32>
    %137 = arith.addf %135, %136 : vector<8x32xf32>
    %138 = math.tanh %137 : vector<8x32xf32>
    %139 = arith.mulf %134, %138 : vector<8x32xf32>
    %c3_i32 = arith.constant 3 : i32
    %140 = arith.index_cast %c3_i32 : i32 to index
    %c0_45 = arith.constant 0 : index
    %c0_46 = arith.constant 0 : index
    %141 = vector.load %arg9[%140, %c0_45, %c0_46] : memref<8x8x128xf32, #tpu.memory_space<vmem>>, vector<1x8x128xf32>
    %142 = vector.shape_cast %141 : vector<1x8x128xf32> to vector<8x128xf32>
    %cst_47 = arith.constant dense<0.000000e+00> : vector<8x128xf32>
    %143 = tpu.matmul %119, %0, %cst_47 {dimension_numbers = #tpu.dot_dimension_numbers<[1], [0], [0], [1], [0, 0, 1, 1], [], []>} : vector<8x32xf32>, vector<32x128xf32>, vector<8x128xf32> -> vector<8x128xf32>
    %144 = arith.addf %142, %143 : vector<8x128xf32>
    %cst_48 = arith.constant 0.000000e+00 : f32
    %145 = vector.broadcast %cst_48 : f32 to vector<8x128xf32>
    %146 = arith.subf %145, %144 : vector<8x128xf32>
    %147 = math.exp %146 : vector<8x128xf32>
    %cst_49 = arith.constant 1.000000e+00 : f32
    %148 = vector.broadcast %cst_49 : f32 to vector<8x128xf32>
    %149 = arith.addf %148, %147 : vector<8x128xf32>
    %cst_50 = arith.constant 1.000000e+00 : f32
    %150 = vector.broadcast %cst_50 : f32 to vector<8x128xf32>
    %151 = arith.divf %150, %149 : vector<8x128xf32>
    %152 = math.tanh %144 : vector<8x128xf32>
    %153 = vector.extract_strided_slice %151 {offsets = [0, 0], sizes = [8, 32], strides = [1, 1]} : vector<8x128xf32> to vector<8x32xf32>
    %154 = vector.extract_strided_slice %151 {offsets = [0, 32], sizes = [8, 32], strides = [1, 1]} : vector<8x128xf32> to vector<8x32xf32>
    %155 = vector.extract_strided_slice %152 {offsets = [0, 64], sizes = [8, 32], strides = [1, 1]} : vector<8x128xf32> to vector<8x32xf32>
    %156 = vector.extract_strided_slice %151 {offsets = [0, 96], sizes = [8, 32], strides = [1, 1]} : vector<8x128xf32> to vector<8x32xf32>
    %157 = arith.mulf %154, %117 : vector<8x32xf32>
    %158 = arith.mulf %153, %155 : vector<8x32xf32>
    %159 = arith.addf %157, %158 : vector<8x32xf32>
    %160 = math.tanh %159 : vector<8x32xf32>
    %161 = arith.mulf %156, %160 : vector<8x32xf32>
    %162 = tpu.concatenate %161, %139 in 1 : vector<8x32xf32>, vector<8x32xf32> -> vector<8x64xf32>
    %cst_51 = arith.constant dense<0.000000e+00> : vector<8x128xf32>
    %163 = tpu.matmul %162, %1, %cst_51 {dimension_numbers = #tpu.dot_dimension_numbers<[1], [0], [0], [1], [0, 0, 1, 1], [], []>} : vector<8x64xf32>, vector<64x128xf32>, vector<8x128xf32> -> vector<8x128xf32>
    %164 = arith.addf %163, %4 : vector<8x128xf32>
    %cst_52 = arith.constant 0.000000e+00 : f32
    %165 = vector.broadcast %cst_52 : f32 to vector<8x128xf32>
    %166 = arith.subf %165, %164 : vector<8x128xf32>
    %167 = math.exp %166 : vector<8x128xf32>
    %cst_53 = arith.constant 1.000000e+00 : f32
    %168 = vector.broadcast %cst_53 : f32 to vector<8x128xf32>
    %169 = arith.addf %168, %167 : vector<8x128xf32>
    %cst_54 = arith.constant 1.000000e+00 : f32
    %170 = vector.broadcast %cst_54 : f32 to vector<8x128xf32>
    %171 = arith.divf %170, %169 : vector<8x128xf32>
    %172 = math.tanh %164 : vector<8x128xf32>
    %173 = vector.extract_strided_slice %171 {offsets = [0, 0], sizes = [8, 32], strides = [1, 1]} : vector<8x128xf32> to vector<8x32xf32>
    %174 = vector.extract_strided_slice %171 {offsets = [0, 32], sizes = [8, 32], strides = [1, 1]} : vector<8x128xf32> to vector<8x32xf32>
    %175 = vector.extract_strided_slice %172 {offsets = [0, 64], sizes = [8, 32], strides = [1, 1]} : vector<8x128xf32> to vector<8x32xf32>
    %176 = vector.extract_strided_slice %171 {offsets = [0, 96], sizes = [8, 32], strides = [1, 1]} : vector<8x128xf32> to vector<8x32xf32>
    %177 = arith.mulf %174, %137 : vector<8x32xf32>
    %178 = arith.mulf %173, %175 : vector<8x32xf32>
    %179 = arith.addf %177, %178 : vector<8x32xf32>
    %180 = math.tanh %179 : vector<8x32xf32>
    %181 = arith.mulf %176, %180 : vector<8x32xf32>
    %c4_i32 = arith.constant 4 : i32
    %182 = arith.index_cast %c4_i32 : i32 to index
    %c0_55 = arith.constant 0 : index
    %c0_56 = arith.constant 0 : index
    %183 = vector.load %arg9[%182, %c0_55, %c0_56] : memref<8x8x128xf32, #tpu.memory_space<vmem>>, vector<1x8x128xf32>
    %184 = vector.shape_cast %183 : vector<1x8x128xf32> to vector<8x128xf32>
    %cst_57 = arith.constant dense<0.000000e+00> : vector<8x128xf32>
    %185 = tpu.matmul %161, %0, %cst_57 {dimension_numbers = #tpu.dot_dimension_numbers<[1], [0], [0], [1], [0, 0, 1, 1], [], []>} : vector<8x32xf32>, vector<32x128xf32>, vector<8x128xf32> -> vector<8x128xf32>
    %186 = arith.addf %184, %185 : vector<8x128xf32>
    %cst_58 = arith.constant 0.000000e+00 : f32
    %187 = vector.broadcast %cst_58 : f32 to vector<8x128xf32>
    %188 = arith.subf %187, %186 : vector<8x128xf32>
    %189 = math.exp %188 : vector<8x128xf32>
    %cst_59 = arith.constant 1.000000e+00 : f32
    %190 = vector.broadcast %cst_59 : f32 to vector<8x128xf32>
    %191 = arith.addf %190, %189 : vector<8x128xf32>
    %cst_60 = arith.constant 1.000000e+00 : f32
    %192 = vector.broadcast %cst_60 : f32 to vector<8x128xf32>
    %193 = arith.divf %192, %191 : vector<8x128xf32>
    %194 = math.tanh %186 : vector<8x128xf32>
    %195 = vector.extract_strided_slice %193 {offsets = [0, 0], sizes = [8, 32], strides = [1, 1]} : vector<8x128xf32> to vector<8x32xf32>
    %196 = vector.extract_strided_slice %193 {offsets = [0, 32], sizes = [8, 32], strides = [1, 1]} : vector<8x128xf32> to vector<8x32xf32>
    %197 = vector.extract_strided_slice %194 {offsets = [0, 64], sizes = [8, 32], strides = [1, 1]} : vector<8x128xf32> to vector<8x32xf32>
    %198 = vector.extract_strided_slice %193 {offsets = [0, 96], sizes = [8, 32], strides = [1, 1]} : vector<8x128xf32> to vector<8x32xf32>
    %199 = arith.mulf %196, %159 : vector<8x32xf32>
    %200 = arith.mulf %195, %197 : vector<8x32xf32>
    %201 = arith.addf %199, %200 : vector<8x32xf32>
    %202 = math.tanh %201 : vector<8x32xf32>
    %203 = arith.mulf %198, %202 : vector<8x32xf32>
    %204 = tpu.concatenate %203, %181 in 1 : vector<8x32xf32>, vector<8x32xf32> -> vector<8x64xf32>
    %cst_61 = arith.constant dense<0.000000e+00> : vector<8x128xf32>
    %205 = tpu.matmul %204, %1, %cst_61 {dimension_numbers = #tpu.dot_dimension_numbers<[1], [0], [0], [1], [0, 0, 1, 1], [], []>} : vector<8x64xf32>, vector<64x128xf32>, vector<8x128xf32> -> vector<8x128xf32>
    %206 = arith.addf %205, %4 : vector<8x128xf32>
    %cst_62 = arith.constant 0.000000e+00 : f32
    %207 = vector.broadcast %cst_62 : f32 to vector<8x128xf32>
    %208 = arith.subf %207, %206 : vector<8x128xf32>
    %209 = math.exp %208 : vector<8x128xf32>
    %cst_63 = arith.constant 1.000000e+00 : f32
    %210 = vector.broadcast %cst_63 : f32 to vector<8x128xf32>
    %211 = arith.addf %210, %209 : vector<8x128xf32>
    %cst_64 = arith.constant 1.000000e+00 : f32
    %212 = vector.broadcast %cst_64 : f32 to vector<8x128xf32>
    %213 = arith.divf %212, %211 : vector<8x128xf32>
    %214 = math.tanh %206 : vector<8x128xf32>
    %215 = vector.extract_strided_slice %213 {offsets = [0, 0], sizes = [8, 32], strides = [1, 1]} : vector<8x128xf32> to vector<8x32xf32>
    %216 = vector.extract_strided_slice %213 {offsets = [0, 32], sizes = [8, 32], strides = [1, 1]} : vector<8x128xf32> to vector<8x32xf32>
    %217 = vector.extract_strided_slice %214 {offsets = [0, 64], sizes = [8, 32], strides = [1, 1]} : vector<8x128xf32> to vector<8x32xf32>
    %218 = vector.extract_strided_slice %213 {offsets = [0, 96], sizes = [8, 32], strides = [1, 1]} : vector<8x128xf32> to vector<8x32xf32>
    %219 = arith.mulf %216, %179 : vector<8x32xf32>
    %220 = arith.mulf %215, %217 : vector<8x32xf32>
    %221 = arith.addf %219, %220 : vector<8x32xf32>
    %222 = math.tanh %221 : vector<8x32xf32>
    %223 = arith.mulf %218, %222 : vector<8x32xf32>
    %c5_i32 = arith.constant 5 : i32
    %224 = arith.index_cast %c5_i32 : i32 to index
    %c0_65 = arith.constant 0 : index
    %c0_66 = arith.constant 0 : index
    %225 = vector.load %arg9[%224, %c0_65, %c0_66] : memref<8x8x128xf32, #tpu.memory_space<vmem>>, vector<1x8x128xf32>
    %226 = vector.shape_cast %225 : vector<1x8x128xf32> to vector<8x128xf32>
    %cst_67 = arith.constant dense<0.000000e+00> : vector<8x128xf32>
    %227 = tpu.matmul %203, %0, %cst_67 {dimension_numbers = #tpu.dot_dimension_numbers<[1], [0], [0], [1], [0, 0, 1, 1], [], []>} : vector<8x32xf32>, vector<32x128xf32>, vector<8x128xf32> -> vector<8x128xf32>
    %228 = arith.addf %226, %227 : vector<8x128xf32>
    %cst_68 = arith.constant 0.000000e+00 : f32
    %229 = vector.broadcast %cst_68 : f32 to vector<8x128xf32>
    %230 = arith.subf %229, %228 : vector<8x128xf32>
    %231 = math.exp %230 : vector<8x128xf32>
    %cst_69 = arith.constant 1.000000e+00 : f32
    %232 = vector.broadcast %cst_69 : f32 to vector<8x128xf32>
    %233 = arith.addf %232, %231 : vector<8x128xf32>
    %cst_70 = arith.constant 1.000000e+00 : f32
    %234 = vector.broadcast %cst_70 : f32 to vector<8x128xf32>
    %235 = arith.divf %234, %233 : vector<8x128xf32>
    %236 = math.tanh %228 : vector<8x128xf32>
    %237 = vector.extract_strided_slice %235 {offsets = [0, 0], sizes = [8, 32], strides = [1, 1]} : vector<8x128xf32> to vector<8x32xf32>
    %238 = vector.extract_strided_slice %235 {offsets = [0, 32], sizes = [8, 32], strides = [1, 1]} : vector<8x128xf32> to vector<8x32xf32>
    %239 = vector.extract_strided_slice %236 {offsets = [0, 64], sizes = [8, 32], strides = [1, 1]} : vector<8x128xf32> to vector<8x32xf32>
    %240 = vector.extract_strided_slice %235 {offsets = [0, 96], sizes = [8, 32], strides = [1, 1]} : vector<8x128xf32> to vector<8x32xf32>
    %241 = arith.mulf %238, %201 : vector<8x32xf32>
    %242 = arith.mulf %237, %239 : vector<8x32xf32>
    %243 = arith.addf %241, %242 : vector<8x32xf32>
    %244 = math.tanh %243 : vector<8x32xf32>
    %245 = arith.mulf %240, %244 : vector<8x32xf32>
    %246 = tpu.concatenate %245, %223 in 1 : vector<8x32xf32>, vector<8x32xf32> -> vector<8x64xf32>
    %cst_71 = arith.constant dense<0.000000e+00> : vector<8x128xf32>
    %247 = tpu.matmul %246, %1, %cst_71 {dimension_numbers = #tpu.dot_dimension_numbers<[1], [0], [0], [1], [0, 0, 1, 1], [], []>} : vector<8x64xf32>, vector<64x128xf32>, vector<8x128xf32> -> vector<8x128xf32>
    %248 = arith.addf %247, %4 : vector<8x128xf32>
    %cst_72 = arith.constant 0.000000e+00 : f32
    %249 = vector.broadcast %cst_72 : f32 to vector<8x128xf32>
    %250 = arith.subf %249, %248 : vector<8x128xf32>
    %251 = math.exp %250 : vector<8x128xf32>
    %cst_73 = arith.constant 1.000000e+00 : f32
    %252 = vector.broadcast %cst_73 : f32 to vector<8x128xf32>
    %253 = arith.addf %252, %251 : vector<8x128xf32>
    %cst_74 = arith.constant 1.000000e+00 : f32
    %254 = vector.broadcast %cst_74 : f32 to vector<8x128xf32>
    %255 = arith.divf %254, %253 : vector<8x128xf32>
    %256 = math.tanh %248 : vector<8x128xf32>
    %257 = vector.extract_strided_slice %255 {offsets = [0, 0], sizes = [8, 32], strides = [1, 1]} : vector<8x128xf32> to vector<8x32xf32>
    %258 = vector.extract_strided_slice %255 {offsets = [0, 32], sizes = [8, 32], strides = [1, 1]} : vector<8x128xf32> to vector<8x32xf32>
    %259 = vector.extract_strided_slice %256 {offsets = [0, 64], sizes = [8, 32], strides = [1, 1]} : vector<8x128xf32> to vector<8x32xf32>
    %260 = vector.extract_strided_slice %255 {offsets = [0, 96], sizes = [8, 32], strides = [1, 1]} : vector<8x128xf32> to vector<8x32xf32>
    %261 = arith.mulf %258, %221 : vector<8x32xf32>
    %262 = arith.mulf %257, %259 : vector<8x32xf32>
    %263 = arith.addf %261, %262 : vector<8x32xf32>
    %264 = math.tanh %263 : vector<8x32xf32>
    %265 = arith.mulf %260, %264 : vector<8x32xf32>
    %c6_i32 = arith.constant 6 : i32
    %266 = arith.index_cast %c6_i32 : i32 to index
    %c0_75 = arith.constant 0 : index
    %c0_76 = arith.constant 0 : index
    %267 = vector.load %arg9[%266, %c0_75, %c0_76] : memref<8x8x128xf32, #tpu.memory_space<vmem>>, vector<1x8x128xf32>
    %268 = vector.shape_cast %267 : vector<1x8x128xf32> to vector<8x128xf32>
    %cst_77 = arith.constant dense<0.000000e+00> : vector<8x128xf32>
    %269 = tpu.matmul %245, %0, %cst_77 {dimension_numbers = #tpu.dot_dimension_numbers<[1], [0], [0], [1], [0, 0, 1, 1], [], []>} : vector<8x32xf32>, vector<32x128xf32>, vector<8x128xf32> -> vector<8x128xf32>
    %270 = arith.addf %268, %269 : vector<8x128xf32>
    %cst_78 = arith.constant 0.000000e+00 : f32
    %271 = vector.broadcast %cst_78 : f32 to vector<8x128xf32>
    %272 = arith.subf %271, %270 : vector<8x128xf32>
    %273 = math.exp %272 : vector<8x128xf32>
    %cst_79 = arith.constant 1.000000e+00 : f32
    %274 = vector.broadcast %cst_79 : f32 to vector<8x128xf32>
    %275 = arith.addf %274, %273 : vector<8x128xf32>
    %cst_80 = arith.constant 1.000000e+00 : f32
    %276 = vector.broadcast %cst_80 : f32 to vector<8x128xf32>
    %277 = arith.divf %276, %275 : vector<8x128xf32>
    %278 = math.tanh %270 : vector<8x128xf32>
    %279 = vector.extract_strided_slice %277 {offsets = [0, 0], sizes = [8, 32], strides = [1, 1]} : vector<8x128xf32> to vector<8x32xf32>
    %280 = vector.extract_strided_slice %277 {offsets = [0, 32], sizes = [8, 32], strides = [1, 1]} : vector<8x128xf32> to vector<8x32xf32>
    %281 = vector.extract_strided_slice %278 {offsets = [0, 64], sizes = [8, 32], strides = [1, 1]} : vector<8x128xf32> to vector<8x32xf32>
    %282 = vector.extract_strided_slice %277 {offsets = [0, 96], sizes = [8, 32], strides = [1, 1]} : vector<8x128xf32> to vector<8x32xf32>
    %283 = arith.mulf %280, %243 : vector<8x32xf32>
    %284 = arith.mulf %279, %281 : vector<8x32xf32>
    %285 = arith.addf %283, %284 : vector<8x32xf32>
    %286 = math.tanh %285 : vector<8x32xf32>
    %287 = arith.mulf %282, %286 : vector<8x32xf32>
    %288 = tpu.concatenate %287, %265 in 1 : vector<8x32xf32>, vector<8x32xf32> -> vector<8x64xf32>
    %cst_81 = arith.constant dense<0.000000e+00> : vector<8x128xf32>
    %289 = tpu.matmul %288, %1, %cst_81 {dimension_numbers = #tpu.dot_dimension_numbers<[1], [0], [0], [1], [0, 0, 1, 1], [], []>} : vector<8x64xf32>, vector<64x128xf32>, vector<8x128xf32> -> vector<8x128xf32>
    %290 = arith.addf %289, %4 : vector<8x128xf32>
    %cst_82 = arith.constant 0.000000e+00 : f32
    %291 = vector.broadcast %cst_82 : f32 to vector<8x128xf32>
    %292 = arith.subf %291, %290 : vector<8x128xf32>
    %293 = math.exp %292 : vector<8x128xf32>
    %cst_83 = arith.constant 1.000000e+00 : f32
    %294 = vector.broadcast %cst_83 : f32 to vector<8x128xf32>
    %295 = arith.addf %294, %293 : vector<8x128xf32>
    %cst_84 = arith.constant 1.000000e+00 : f32
    %296 = vector.broadcast %cst_84 : f32 to vector<8x128xf32>
    %297 = arith.divf %296, %295 : vector<8x128xf32>
    %298 = math.tanh %290 : vector<8x128xf32>
    %299 = vector.extract_strided_slice %297 {offsets = [0, 0], sizes = [8, 32], strides = [1, 1]} : vector<8x128xf32> to vector<8x32xf32>
    %300 = vector.extract_strided_slice %297 {offsets = [0, 32], sizes = [8, 32], strides = [1, 1]} : vector<8x128xf32> to vector<8x32xf32>
    %301 = vector.extract_strided_slice %298 {offsets = [0, 64], sizes = [8, 32], strides = [1, 1]} : vector<8x128xf32> to vector<8x32xf32>
    %302 = vector.extract_strided_slice %297 {offsets = [0, 96], sizes = [8, 32], strides = [1, 1]} : vector<8x128xf32> to vector<8x32xf32>
    %303 = arith.mulf %300, %263 : vector<8x32xf32>
    %304 = arith.mulf %299, %301 : vector<8x32xf32>
    %305 = arith.addf %303, %304 : vector<8x32xf32>
    %306 = math.tanh %305 : vector<8x32xf32>
    %307 = arith.mulf %302, %306 : vector<8x32xf32>
    %c7_i32 = arith.constant 7 : i32
    %308 = arith.index_cast %c7_i32 : i32 to index
    %c0_85 = arith.constant 0 : index
    %c0_86 = arith.constant 0 : index
    %309 = vector.load %arg9[%308, %c0_85, %c0_86] : memref<8x8x128xf32, #tpu.memory_space<vmem>>, vector<1x8x128xf32>
    %310 = vector.shape_cast %309 : vector<1x8x128xf32> to vector<8x128xf32>
    %cst_87 = arith.constant dense<0.000000e+00> : vector<8x128xf32>
    %311 = tpu.matmul %287, %0, %cst_87 {dimension_numbers = #tpu.dot_dimension_numbers<[1], [0], [0], [1], [0, 0, 1, 1], [], []>} : vector<8x32xf32>, vector<32x128xf32>, vector<8x128xf32> -> vector<8x128xf32>
    %312 = arith.addf %310, %311 : vector<8x128xf32>
    %cst_88 = arith.constant 0.000000e+00 : f32
    %313 = vector.broadcast %cst_88 : f32 to vector<8x128xf32>
    %314 = arith.subf %313, %312 : vector<8x128xf32>
    %315 = math.exp %314 : vector<8x128xf32>
    %cst_89 = arith.constant 1.000000e+00 : f32
    %316 = vector.broadcast %cst_89 : f32 to vector<8x128xf32>
    %317 = arith.addf %316, %315 : vector<8x128xf32>
    %cst_90 = arith.constant 1.000000e+00 : f32
    %318 = vector.broadcast %cst_90 : f32 to vector<8x128xf32>
    %319 = arith.divf %318, %317 : vector<8x128xf32>
    %320 = math.tanh %312 : vector<8x128xf32>
    %321 = vector.extract_strided_slice %319 {offsets = [0, 0], sizes = [8, 32], strides = [1, 1]} : vector<8x128xf32> to vector<8x32xf32>
    %322 = vector.extract_strided_slice %319 {offsets = [0, 32], sizes = [8, 32], strides = [1, 1]} : vector<8x128xf32> to vector<8x32xf32>
    %323 = vector.extract_strided_slice %320 {offsets = [0, 64], sizes = [8, 32], strides = [1, 1]} : vector<8x128xf32> to vector<8x32xf32>
    %324 = vector.extract_strided_slice %319 {offsets = [0, 96], sizes = [8, 32], strides = [1, 1]} : vector<8x128xf32> to vector<8x32xf32>
    %325 = arith.mulf %322, %285 : vector<8x32xf32>
    %326 = arith.mulf %321, %323 : vector<8x32xf32>
    %327 = arith.addf %325, %326 : vector<8x32xf32>
    %328 = math.tanh %327 : vector<8x32xf32>
    %329 = arith.mulf %324, %328 : vector<8x32xf32>
    %330 = tpu.concatenate %329, %307 in 1 : vector<8x32xf32>, vector<8x32xf32> -> vector<8x64xf32>
    %cst_91 = arith.constant dense<0.000000e+00> : vector<8x128xf32>
    %331 = tpu.matmul %330, %1, %cst_91 {dimension_numbers = #tpu.dot_dimension_numbers<[1], [0], [0], [1], [0, 0, 1, 1], [], []>} : vector<8x64xf32>, vector<64x128xf32>, vector<8x128xf32> -> vector<8x128xf32>
    %332 = arith.addf %331, %4 : vector<8x128xf32>
    %cst_92 = arith.constant 0.000000e+00 : f32
    %333 = vector.broadcast %cst_92 : f32 to vector<8x128xf32>
    %334 = arith.subf %333, %332 : vector<8x128xf32>
    %335 = math.exp %334 : vector<8x128xf32>
    %cst_93 = arith.constant 1.000000e+00 : f32
    %336 = vector.broadcast %cst_93 : f32 to vector<8x128xf32>
    %337 = arith.addf %336, %335 : vector<8x128xf32>
    %cst_94 = arith.constant 1.000000e+00 : f32
    %338 = vector.broadcast %cst_94 : f32 to vector<8x128xf32>
    %339 = arith.divf %338, %337 : vector<8x128xf32>
    %340 = math.tanh %332 : vector<8x128xf32>
    %341 = vector.extract_strided_slice %339 {offsets = [0, 0], sizes = [8, 32], strides = [1, 1]} : vector<8x128xf32> to vector<8x32xf32>
    %342 = vector.extract_strided_slice %339 {offsets = [0, 32], sizes = [8, 32], strides = [1, 1]} : vector<8x128xf32> to vector<8x32xf32>
    %343 = vector.extract_strided_slice %340 {offsets = [0, 64], sizes = [8, 32], strides = [1, 1]} : vector<8x128xf32> to vector<8x32xf32>
    %344 = vector.extract_strided_slice %339 {offsets = [0, 96], sizes = [8, 32], strides = [1, 1]} : vector<8x128xf32> to vector<8x32xf32>
    %345 = arith.mulf %342, %305 : vector<8x32xf32>
    %346 = arith.mulf %341, %343 : vector<8x32xf32>
    %347 = arith.addf %345, %346 : vector<8x32xf32>
    %348 = math.tanh %347 : vector<8x32xf32>
    %349 = arith.mulf %344, %348 : vector<8x32xf32>
    %c8_i32 = arith.constant 8 : i32
    %c0_95 = arith.constant 0 : index
    %c0_96 = arith.constant 0 : index
    %350 = vector.load %arg6[%c0_95, %c0_96] : memref<1x32xf32, #tpu.memory_space<vmem>>, vector<1x32xf32>
    %351 = vector.broadcast %350 : vector<1x32xf32> to vector<8x32xf32>
    %352 = arith.mulf %349, %351 : vector<8x32xf32>
    %cst_97 = arith.constant dense<0.000000e+00> : vector<8xf32>
    %353 = vector.multi_reduction <add>, %352, %cst_97 [1] : vector<8x32xf32> to vector<8xf32>
    %354 = vector.shape_cast %353 : vector<8xf32> to vector<8x1xf32>
    %c0_98 = arith.constant 0 : index
    %c0_99 = arith.constant 0 : index
    %355 = vector.load %arg7[%c0_98, %c0_99] : memref<1x1xf32, #tpu.memory_space<vmem>>, vector<1x1xf32>
    %356 = vector.broadcast %355 : vector<1x1xf32> to vector<8x1xf32>
    %357 = arith.addf %354, %356 : vector<8x1xf32>
    %c0_100 = arith.constant 0 : index
    %c0_101 = arith.constant 0 : index
    %358 = vector.load %arg8[%c0_100, %c0_101] : memref<8x1xf32, #tpu.memory_space<vmem>>, vector<8x1xf32>
    tpu.vector_store %arg8[%c0_100, %c0_101], %357 {strides = array<i32>} : memref<8x1xf32, #tpu.memory_space<vmem>>, vector<8x1xf32>,
    return
  }
}

</mosaic_0001>

<llo_original>
// kernel: lstm_predictor_forward.1
$region0: #{lstm_predictor_forward.1}
  #allocation0 [shape = 'u32[]', space=smem, size = 0x4, offset = 0x4, fixed_abs, tag = 'smem constant byte address 0x4 - core index']
  #allocation1 [shape = 'u32[144,128]{1,0:T(1,128)}', space=vmem, size = 0x12000, scoped, tag = 'internal scratch']
  #allocation2 [shape = 'f32[8,8,128]{2,1,0:T(8,128)}', space=vmem, size = 0x8000, scoped, tag = 'scratch operand']
  #allocation3 [shape = 'f32[1,1]{1,0:T(1,128)S(1)}', space=vmem, size = 0x200, scoped, tag = 'scoped memory for lstm_predictor_forward.1']
  %s0 = inlined_call_operand.vmem [shape: f32[64,8], index: 0, kind: input, shape index: {}]
  %s1 = inlined_call_operand.vmem [shape: f32[8,128], index: 1, kind: input, shape index: {}]
  %s2 = inlined_call_operand.vmem [shape: f32[32,128], index: 2, kind: input, shape index: {}]
  %s3 = inlined_call_operand.vmem [shape: f32[1,128], index: 3, kind: input, shape index: {}]
  %s4 = inlined_call_operand.vmem [shape: f32[64,128], index: 4, kind: input, shape index: {}]
  %s5 = inlined_call_operand.vmem [shape: f32[1,128], index: 5, kind: input, shape index: {}]
  %s6 = inlined_call_operand.vmem [shape: f32[1,32], index: 6, kind: input, shape index: {}]
  %s7 = inlined_call_operand.<no memory space> [shape: f32[1,1], index: 7, kind: input, shape index: {}]
  %s8 = inlined_call_operand.vmem [shape: f32[8,1], index: 8, kind: output, shape index: {}]
  %s9 = sld [smem:[#allocation0]]
  $region42: #{lstm_predictor_forward.1} parent=0
    _
  %s11 = ssub.s32 1, %s9
  %s12 = scalar_select 0, %s11, %s9
  %v13 = vstv %s7
  %14 = vst [vmem:[#allocation3] sm:$0x1] %v13
  // Predicated region
  $region2: #{lstm_predictor_forward.1} parent=0 // pred_check
    _
  $region3: #{lstm_predictor_forward.1} parent=0 // pred_check_branch
    %16 = sbr.rel (0) target = $region5
  $region4: #{lstm_predictor_forward.1} parent=0 // pred_region
    _
  $region5: #{lstm_predictor_forward.1} parent=0 // pred_fallthru
    _
  // Predicated region
  $region6: #{lstm_predictor_forward.1} parent=0 // pred_check
    _
  $region7: #{lstm_predictor_forward.1} parent=0 // pred_check_branch
    %18 = sbr.rel (0) target = $region9
  $region8: #{lstm_predictor_forward.1} parent=0 // pred_region
    _
  $region9: #{lstm_predictor_forward.1} parent=0 // pred_fallthru
    _
  // Predicated region
  $region10: #{lstm_predictor_forward.1} parent=0 // pred_check
    _
  $region11: #{lstm_predictor_forward.1} parent=0 // pred_check_branch
    %20 = sbr.rel (0) target = $region13
  $region12: #{lstm_predictor_forward.1} parent=0 // pred_region
    _
  $region13: #{lstm_predictor_forward.1} parent=0 // pred_fallthru
    _
  // Predicated region
  $region14: #{lstm_predictor_forward.1} parent=0 // pred_check
    _
  $region15: #{lstm_predictor_forward.1} parent=0 // pred_check_branch
    %22 = sbr.rel (0) target = $region17
  $region16: #{lstm_predictor_forward.1} parent=0 // pred_region
    _
  $region17: #{lstm_predictor_forward.1} parent=0 // pred_fallthru
    _
  // Predicated region
  $region18: #{lstm_predictor_forward.1} parent=0 // pred_check
    _
  $region19: #{lstm_predictor_forward.1} parent=0 // pred_check_branch
    %24 = sbr.rel (0) target = $region21
  $region20: #{lstm_predictor_forward.1} parent=0 // pred_region
    _
  $region21: #{lstm_predictor_forward.1} parent=0 // pred_fallthru
    _
  // Predicated region
  $region22: #{lstm_predictor_forward.1} parent=0 // pred_check
    _
  $region23: #{lstm_predictor_forward.1} parent=0 // pred_check_branch
    %26 = sbr.rel (0) target = $region25
  $region24: #{lstm_predictor_forward.1} parent=0 // pred_region
    _
  $region25: #{lstm_predictor_forward.1} parent=0 // pred_fallthru
    _
  // Predicated region
  $region26: #{lstm_predictor_forward.1} parent=0 // pred_check
    _
  $region27: #{lstm_predictor_forward.1} parent=0 // pred_check_branch
    %28 = sbr.rel (0) target = $region29
  $region28: #{lstm_predictor_forward.1} parent=0 // pred_region
    _
  $region29: #{lstm_predictor_forward.1} parent=0 // pred_fallthru
    _
  // Predicated region
  $region30: #{lstm_predictor_forward.1} parent=0 // pred_check
    _
  $region31: #{lstm_predictor_forward.1} parent=0 // pred_check_branch
    %30 = sbr.rel (0) target = $region33
  $region32: #{lstm_predictor_forward.1} parent=0 // pred_region
    _
  $region33: #{lstm_predictor_forward.1} parent=0 // pred_fallthru
    _
  %v31 = vld [vmem:[%s2] sm:$0xff]
  %v32 = vld [vmem:[%s2 + $0x8] sm:$0xff]
  %v33 = vld [vmem:[%s2 + $0x10] sm:$0xff]
  %v34 = vld [vmem:[%s2 + $0x18] sm:$0xff]
  %v35 = vld [vmem:[%s4] sm:$0xff]
  %v36 = vld [vmem:[%s4 + $0x8] sm:$0xff]
  %v37 = vld [vmem:[%s4 + $0x10] sm:$0xff]
  %v38 = vld [vmem:[%s4 + $0x18] sm:$0xff]
  %v39 = vld [vmem:[%s4 + $0x20] sm:$0xff]
  %v40 = vld [vmem:[%s4 + $0x28] sm:$0xff]
  %v41 = vld [vmem:[%s4 + $0x30] sm:$0xff]
  %v42 = vld [vmem:[%s4 + $0x38] sm:$0xff]
  %v43 = vld [vmem:[%s5] sm:$0x1]
  %v45 = vlaneseq
  %v46 = vshrl.u32 %v45, 7
  %v47 = vsub.s32 0, %v46
  %v48 = vrot.slane %v43, %v47
  %v50 = vld [vmem:[%s0] sm:$0xff]
  %v51 = vld [vmem:[%s0 + $0x8] sm:$0xff]
  %v52 = vld [vmem:[%s0 + $0x10] sm:$0xff]
  %v53 = vld [vmem:[%s0 + $0x18] sm:$0xff]
  %v54 = vld [vmem:[%s0 + $0x20] sm:$0xff]
  %v55 = vld [vmem:[%s0 + $0x28] sm:$0xff]
  %v56 = vld [vmem:[%s0 + $0x30] sm:$0xff]
  %v57 = vld [vmem:[%s0 + $0x38] sm:$0xff]
  %v58 = vld [vmem:[%s1] sm:$0xff]
  %v59 = vld [vmem:[%s3] sm:$0x1]
  %v61 = vlaneseq
  %v62 = vshrl.u32 %v61, 7
  %v63 = vsub.s32 0, %v62
  %v64 = vrot.slane %v59, %v63
  %vm66 = vcmask 64512
  %v68 = vsel %vm66, %v50, 0
  %v71 = vsel %vm66, %v51, 0
  %v74 = vsel %vm66, %v52, 0
  %v77 = vsel %vm66, %v53, 0
  %v80 = vsel %vm66, %v54, 0
  %v83 = vsel %vm66, %v55, 0
  %v86 = vsel %vm66, %v56, 0
  %v89 = vsel %vm66, %v57, 0
  %91 = vmatprep.subr.mxu0 0.0
  %92 = vmatpush1.msra.mxu0 %v58
  %93 = vmatprep.subr.mxu0 0.0
  %94 = vmatpush1.msra.mxu0 0.0
  %95 = vmatprep.subr.mxu0 0.0
  %96 = vmatpush1.msra.mxu0 0.0
  %97 = vmatprep.subr.mxu0 0.0
  %98 = vmatpush1.msra.mxu0 0.0
  %99 = vmatprep.subr.mxu0 0.0
  %100 = vmatpush1.msra.mxu0 0.0
  %101 = vmatprep.subr.mxu0 0.0
  %102 = vmatpush1.msra.mxu0 0.0
  %103 = vmatprep.subr.mxu0 0.0
  %104 = vmatpush1.msra.mxu0 0.0
  %105 = vmatprep.subr.mxu0 0.0
  %106 = vmatpush1.msra.mxu0 0.0
  %107 = vmatprep.subr.mxu0 0.0
  %108 = vmatpush1.msra.mxu0 0.0
  %109 = vmatprep.subr.mxu0 0.0
  %110 = vmatpush1.msra.mxu0 0.0
  %111 = vmatprep.subr.mxu0 0.0
  %112 = vmatpush1.msra.mxu0 0.0
  %113 = vmatprep.subr.mxu0 0.0
  %114 = vmatpush1.msra.mxu0 0.0
  %115 = vmatprep.subr.mxu0 0.0
  %116 = vmatpush1.msra.mxu0 0.0
  %117 = vmatprep.subr.mxu0 0.0
  %118 = vmatpush1.msra.mxu0 0.0
  %119 = vmatprep.subr.mxu0 0.0
  %120 = vmatpush1.msra.mxu0 0.0
  %121 = vmatprep.subr.mxu0 0.0
  %122 = vmatpush1.msra.mxu0 0.0
  %123 = vmatprep.subr.mxu0 0.0
  %124 = vmatpush1.msra.mxu0 0.0
  %125 = vmatprep.subr.mxu0 0.0
  %126 = vmatpush1.msra.mxu0 0.0
  %127 = vmatprep.subr.mxu0 0.0
  %128 = vmatpush1.msra.mxu0 0.0
  %129 = vmatprep.subr.mxu0 0.0
  %130 = vmatpush1.msra.mxu0 0.0
  %131 = vmatprep.subr.mxu0 0.0
  %132 = vmatpush1.msra.mxu0 0.0
  %133 = vmatprep.subr.mxu0 0.0
  %134 = vmatpush1.msra.mxu0 0.0
  %135 = vmatprep.subr.mxu0 0.0
  %136 = vmatpush1.msra.mxu0 0.0
  %137 = vmatprep.subr.mxu0 0.0
  %138 = vmatpush1.msra.mxu0 0.0
  %139 = vmatprep.subr.mxu0 0.0
  %140 = vmatpush1.msra.mxu0 0.0
  %141 = vmatprep.subr.mxu0 0.0
  %142 = vmatpush1.msra.mxu0 0.0
  %143 = vmatprep.subr.mxu0 0.0
  %144 = vmatpush1.msra.mxu0 0.0
  %145 = vmatprep.subr.mxu0 0.0
  %146 = vmatpush1.msra.mxu0 0.0
  %147 = vmatprep.subr.mxu0 0.0
  %148 = vmatpush1.msra.mxu0 0.0
  %149 = vmatprep.subr.mxu0 0.0
  %150 = vmatpush1.msra.mxu0 0.0
  %151 = vmatprep.subr.mxu0 0.0
  %152 = vmatpush1.msra.mxu0 0.0
  %153 = vmatprep.subr.mxu0 0.0
  %154 = vmatpush1.msra.mxu0 0.0
  %155 = vmatprep.mubr.f32.mxu0 0.0
  %156 = vmatmul.mubr.f32.gmra.mrb[0].mxu0 %v68
  %v157 = vpop.f32.mrb[0].mxu0
  %v158 = vadd.f32 %v64, %v157
  %v159 = vpop.f32.mrb[0].mxu0
  %160 = vmatprep.mubr.f32.mxu0 0.0
  %161 = vmatmul.mubr.f32.gmra.mrb[0].mxu0 %v71
  %v162 = vpop.f32.mrb[0].mxu0
  %v163 = vadd.f32 %v64, %v162
  %v164 = vpop.f32.mrb[0].mxu0
  %165 = vmatprep.mubr.f32.mxu0 0.0
  %166 = vmatmul.mubr.f32.gmra.mrb[0].mxu0 %v74
  %v167 = vpop.f32.mrb[0].mxu0
  %v168 = vadd.f32 %v64, %v167
  %v169 = vpop.f32.mrb[0].mxu0
  %170 = vmatprep.mubr.f32.mxu0 0.0
  %171 = vmatmul.mubr.f32.gmra.mrb[0].mxu0 %v77
  %v172 = vpop.f32.mrb[0].mxu0
  %v173 = vadd.f32 %v64, %v172
  %v174 = vpop.f32.mrb[0].mxu0
  %175 = vmatprep.mubr.f32.mxu0 0.0
  %176 = vmatmul.mubr.f32.gmra.mrb[0].mxu0 %v80
  %v177 = vpop.f32.mrb[0].mxu0
  %v178 = vadd.f32 %v64, %v177
  %v179 = vpop.f32.mrb[0].mxu0
  %180 = vmatprep.mubr.f32.mxu0 0.0
  %181 = vmatmul.mubr.f32.gmra.mrb[0].mxu0 %v83
  %v182 = vpop.f32.mrb[0].mxu0
  %v183 = vadd.f32 %v64, %v182
  %v184 = vpop.f32.mrb[0].mxu0
  %185 = vmatprep.mubr.f32.mxu0 0.0
  %186 = vmatmul.mubr.f32.gmra.mrb[0].mxu0 %v86
  %v187 = vpop.f32.mrb[0].mxu0
  %v188 = vadd.f32 %v64, %v187
  %v189 = vpop.f32.mrb[0].mxu0
  %190 = vmatprep.mubr.f32.mxu0 0.0
  %191 = vmatmul.mubr.f32.gmra.mrb[0].mxu0 %v89
  %v192 = vpop.f32.mrb[0].mxu0
  %v193 = vadd.f32 %v64, %v192
  %v194 = vpop.f32.mrb[0].mxu0
  %195 = vdwg.mxu0
  %196 = vst [vmem:[#allocation2] sm:$0xff] %v158
  %197 = vst [vmem:[#allocation2 + $0x8] sm:$0xff] %v163
  %198 = vst [vmem:[#allocation2 + $0x10] sm:$0xff] %v168
  %199 = vst [vmem:[#allocation2 + $0x18] sm:$0xff] %v173
  %200 = vst [vmem:[#allocation2 + $0x20] sm:$0xff] %v178
  %201 = vst [vmem:[#allocation2 + $0x28] sm:$0xff] %v183
  %202 = vst [vmem:[#allocation2 + $0x30] sm:$0xff] %v188
  %203 = vst [vmem:[#allocation2 + $0x38] sm:$0xff] %v193
  %v204 = vld [vmem:[#allocation2] sm:$0xff]
  %vm205 = vcmask 261120
  %v207 = vsel %vm205, 0.0, 0
  %209 = vmatprep.subr.mxu0 0.0
  %210 = vmatpush1.msra.mxu0 %v31
  %211 = vmatprep.subr.mxu0 0.0
  %212 = vmatpush1.msra.mxu0 %v32
  %213 = vmatprep.subr.mxu0 0.0
  %214 = vmatpush1.msra.mxu0 %v33
  %215 = vmatprep.subr.mxu0 0.0
  %216 = vmatpush1.msra.mxu0 %v34
  %217 = vmatprep.subr.mxu0 0.0
  %218 = vmatpush1.msra.mxu0 0.0
  %219 = vmatprep.subr.mxu0 0.0
  %220 = vmatpush1.msra.mxu0 0.0
  %221 = vmatprep.subr.mxu0 0.0
  %222 = vmatpush1.msra.mxu0 0.0
  %223 = vmatprep.subr.mxu0 0.0
  %224 = vmatpush1.msra.mxu0 0.0
  %225 = vmatprep.subr.mxu0 0.0
  %226 = vmatpush1.msra.mxu0 0.0
  %227 = vmatprep.subr.mxu0 0.0
  %228 = vmatpush1.msra.mxu0 0.0
  %229 = vmatprep.subr.mxu0 0.0
  %230 = vmatpush1.msra.mxu0 0.0
  %231 = vmatprep.subr.mxu0 0.0
  %232 = vmatpush1.msra.mxu0 0.0
  %233 = vmatprep.subr.mxu0 0.0
  %234 = vmatpush1.msra.mxu0 0.0
  %235 = vmatprep.subr.mxu0 0.0
  %236 = vmatpush1.msra.mxu0 0.0
  %237 = vmatprep.subr.mxu0 0.0
  %238 = vmatpush1.msra.mxu0 0.0
  %239 = vmatprep.subr.mxu0 0.0
  %240 = vmatpush1.msra.mxu0 0.0
  %241 = vmatprep.subr.mxu0 0.0
  %242 = vmatpush1.msra.mxu0 0.0
  %243 = vmatprep.subr.mxu0 0.0
  %244 = vmatpush1.msra.mxu0 0.0
  %245 = vmatprep.subr.mxu0 0.0
  %246 = vmatpush1.msra.mxu0 0.0
  %247 = vmatprep.subr.mxu0 0.0
  %248 = vmatpush1.msra.mxu0 0.0
  %249 = vmatprep.subr.mxu0 0.0
  %250 = vmatpush1.msra.mxu0 0.0
  %251 = vmatprep.subr.mxu0 0.0
  %252 = vmatpush1.msra.mxu0 0.0
  %253 = vmatprep.subr.mxu0 0.0
  %254 = vmatpush1.msra.mxu0 0.0
  %255 = vmatprep.subr.mxu0 0.0
  %256 = vmatpush1.msra.mxu0 0.0
  %257 = vmatprep.subr.mxu0 0.0
  %258 = vmatpush1.msra.mxu0 0.0
  %259 = vmatprep.subr.mxu0 0.0
  %260 = vmatpush1.msra.mxu0 0.0
  %261 = vmatprep.subr.mxu0 0.0
  %262 = vmatpush1.msra.mxu0 0.0
  %263 = vmatprep.subr.mxu0 0.0
  %264 = vmatpush1.msra.mxu0 0.0
  %265 = vmatprep.subr.mxu0 0.0
  %266 = vmatpush1.msra.mxu0 0.0
  %267 = vmatprep.subr.mxu0 0.0
  %268 = vmatpush1.msra.mxu0 0.0
  %269 = vmatprep.subr.mxu0 0.0
  %270 = vmatpush1.msra.mxu0 0.0
  %271 = vmatprep.subr.mxu0 0.0
  %272 = vmatpush1.msra.mxu0 0.0
  %273 = vmatprep.mubr.f32.mxu0 0.0
  %274 = vmatmul.mubr.f32.gmra.mrb[0].mxu0 %v207
  %v275 = vpop.f32.mrb[0].mxu0
  %v276 = vadd.f32 0.0, %v275
  %v277 = vpop.f32.mrb[0].mxu0
  %278 = vdwg.mxu0
  %v279 = vadd.f32 %v204, %v276
  %v280 = vsub.f32 0.0, %v279
  %v281 = vmul.f32 %v280, 1.442695
  %v282 = vpow.pop %v281
  %v283 = vadd.f32 %v282, 1.0
  %v284 = vrcp.pop %v283
  %v285 = vmul.f32 1.0, %v284
  %v286 = vtanh.pop %v279
  %v287 = vmul.f32 %v285, 0.0
  %289 = vrot.lane.b32.xlu0 %v286, 64
  %v290 = vpop.permute.xlu0 %289
  %v292 = vmul.f32 %v285, %v290
  %294 = vrot.lane.b32.xlu0 %v292, 32
  %v295 = vpop.permute.xlu0 %294
  %v297 = vadd.f32 %v287, %v295
  %v298 = vtanh.pop %v297
  %300 = vrot.lane.b32.xlu0 %v298, 64
  %v301 = vpop.permute.xlu0 %300
  %v303 = vmul.f32 %v285, %v301
  %305 = vrot.lane.b32.xlu0 %v303, 32
  %v306 = vpop.permute.xlu0 %305
  %v308 = vsel %vm205, %v306, 0.0
  %vm309 = vcmask 523264
  %v311 = vsel %vm309, %v308, 0
  %313 = vmatprep.subr.mxu0 0.0
  %314 = vmatpush1.msra.mxu0 %v35
  %315 = vmatprep.subr.mxu0 0.0
  %316 = vmatpush1.msra.mxu0 %v36
  %317 = vmatprep.subr.mxu0 0.0
  %318 = vmatpush1.msra.mxu0 %v37
  %319 = vmatprep.subr.mxu0 0.0
  %320 = vmatpush1.msra.mxu0 %v38
  %321 = vmatprep.subr.mxu0 0.0
  %322 = vmatpush1.msra.mxu0 %v39
  %323 = vmatprep.subr.mxu0 0.0
  %324 = vmatpush1.msra.mxu0 %v40
  %325 = vmatprep.subr.mxu0 0.0
  %326 = vmatpush1.msra.mxu0 %v41
  %327 = vmatprep.subr.mxu0 0.0
  %328 = vmatpush1.msra.mxu0 %v42
  %329 = vmatprep.subr.mxu0 0.0
  %330 = vmatpush1.msra.mxu0 0.0
  %331 = vmatprep.subr.mxu0 0.0
  %332 = vmatpush1.msra.mxu0 0.0
  %333 = vmatprep.subr.mxu0 0.0
  %334 = vmatpush1.msra.mxu0 0.0
  %335 = vmatprep.subr.mxu0 0.0
  %336 = vmatpush1.msra.mxu0 0.0
  %337 = vmatprep.subr.mxu0 0.0
  %338 = vmatpush1.msra.mxu0 0.0
  %339 = vmatprep.subr.mxu0 0.0
  %340 = vmatpush1.msra.mxu0 0.0
  %341 = vmatprep.subr.mxu0 0.0
  %342 = vmatpush1.msra.mxu0 0.0
  %343 = vmatprep.subr.mxu0 0.0
  %344 = vmatpush1.msra.mxu0 0.0
  %345 = vmatprep.subr.mxu0 0.0
  %346 = vmatpush1.msra.mxu0 0.0
  %347 = vmatprep.subr.mxu0 0.0
  %348 = vmatpush1.msra.mxu0 0.0
  %349 = vmatprep.subr.mxu0 0.0
  %350 = vmatpush1.msra.mxu0 0.0
  %351 = vmatprep.subr.mxu0 0.0
  %352 = vmatpush1.msra.mxu0 0.0
  %353 = vmatprep.subr.mxu0 0.0
  %354 = vmatpush1.msra.mxu0 0.0
  %355 = vmatprep.subr.mxu0 0.0
  %356 = vmatpush1.msra.mxu0 0.0
  %357 = vmatprep.subr.mxu0 0.0
  %358 = vmatpush1.msra.mxu0 0.0
  %359 = vmatprep.subr.mxu0 0.0
  %360 = vmatpush1.msra.mxu0 0.0
  %361 = vmatprep.subr.mxu0 0.0
  %362 = vmatpush1.msra.mxu0 0.0
  %363 = vmatprep.subr.mxu0 0.0
  %364 = vmatpush1.msra.mxu0 0.0
  %365 = vmatprep.subr.mxu0 0.0
  %366 = vmatpush1.msra.mxu0 0.0
  %367 = vmatprep.subr.mxu0 0.0
  %368 = vmatpush1.msra.mxu0 0.0
  %369 = vmatprep.subr.mxu0 0.0
  %370 = vmatpush1.msra.mxu0 0.0
  %371 = vmatprep.subr.mxu0 0.0
  %372 = vmatpush1.msra.mxu0 0.0
  %373 = vmatprep.subr.mxu0 0.0
  %374 = vmatpush1.msra.mxu0 0.0
  %375 = vmatprep.subr.mxu0 0.0
  %376 = vmatpush1.msra.mxu0 0.0
  %377 = vmatprep.mubr.f32.mxu0 0.0
  %378 = vmatmul.mubr.f32.gmra.mrb[0].mxu0 %v311
  %v379 = vpop.f32.mrb[0].mxu0
  %v380 = vadd.f32 %v48, %v379
  %v381 = vpop.f32.mrb[0].mxu0
  %382 = vdwg.mxu0
  %v383 = vsub.f32 0.0, %v380
  %v384 = vmul.f32 %v383, 1.442695
  %v385 = vpow.pop %v384
  %v386 = vadd.f32 %v385, 1.0
  %v387 = vrcp.pop %v386
  %v388 = vmul.f32 1.0, %v387
  %v389 = vtanh.pop %v380
  %v390 = vmul.f32 %v388, 0.0
  %392 = vrot.lane.b32.xlu0 %v389, 64
  %v393 = vpop.permute.xlu0 %392
  %v395 = vmul.f32 %v388, %v393
  %397 = vrot.lane.b32.xlu0 %v395, 32
  %v398 = vpop.permute.xlu0 %397
  %v400 = vadd.f32 %v390, %v398
  %v401 = vtanh.pop %v400
  %403 = vrot.lane.b32.xlu0 %v401, 64
  %v404 = vpop.permute.xlu0 %403
  %v406 = vmul.f32 %v388, %v404
  %s407 = scalar_lea.vmem [#allocation2], 8
  %v408 = vld [vmem:[%s407] sm:$0xff]
  %v409 = vsel %vm205, %v306, 0
  %411 = vmatprep.subr.mxu0 0.0
  %412 = vmatpush1.msra.mxu0 %v31
  %413 = vmatprep.subr.mxu0 0.0
  %414 = vmatpush1.msra.mxu0 %v32
  %415 = vmatprep.subr.mxu0 0.0
  %416 = vmatpush1.msra.mxu0 %v33
  %417 = vmatprep.subr.mxu0 0.0
  %418 = vmatpush1.msra.mxu0 %v34
  %419 = vmatprep.subr.mxu0 0.0
  %420 = vmatpush1.msra.mxu0 0.0
  %421 = vmatprep.subr.mxu0 0.0
  %422 = vmatpush1.msra.mxu0 0.0
  %423 = vmatprep.subr.mxu0 0.0
  %424 = vmatpush1.msra.mxu0 0.0
  %425 = vmatprep.subr.mxu0 0.0
  %426 = vmatpush1.msra.mxu0 0.0
  %427 = vmatprep.subr.mxu0 0.0
  %428 = vmatpush1.msra.mxu0 0.0
  %429 = vmatprep.subr.mxu0 0.0
  %430 = vmatpush1.msra.mxu0 0.0
  %431 = vmatprep.subr.mxu0 0.0
  %432 = vmatpush1.msra.mxu0 0.0
  %433 = vmatprep.subr.mxu0 0.0
  %434 = vmatpush1.msra.mxu0 0.0
  %435 = vmatprep.subr.mxu0 0.0
  %436 = vmatpush1.msra.mxu0 0.0
  %437 = vmatprep.subr.mxu0 0.0
  %438 = vmatpush1.msra.mxu0 0.0
  %439 = vmatprep.subr.mxu0 0.0
  %440 = vmatpush1.msra.mxu0 0.0
  %441 = vmatprep.subr.mxu0 0.0
  %442 = vmatpush1.msra.mxu0 0.0
  %443 = vmatprep.subr.mxu0 0.0
  %444 = vmatpush1.msra.mxu0 0.0
  %445 = vmatprep.subr.mxu0 0.0
  %446 = vmatpush1.msra.mxu0 0.0
  %447 = vmatprep.subr.mxu0 0.0
  %448 = vmatpush1.msra.mxu0 0.0
  %449 = vmatprep.subr.mxu0 0.0
  %450 = vmatpush1.msra.mxu0 0.0
  %451 = vmatprep.subr.mxu0 0.0
  %452 = vmatpush1.msra.mxu0 0.0
  %453 = vmatprep.subr.mxu0 0.0
  %454 = vmatpush1.msra.mxu0 0.0
  %455 = vmatprep.subr.mxu0 0.0
  %456 = vmatpush1.msra.mxu0 0.0
  %457 = vmatprep.subr.mxu0 0.0
  %458 = vmatpush1.msra.mxu0 0.0
  %459 = vmatprep.subr.mxu0 0.0
  %460 = vmatpush1.msra.mxu0 0.0
  %461 = vmatprep.subr.mxu0 0.0
  %462 = vmatpush1.msra.mxu0 0.0
  %463 = vmatprep.subr.mxu0 0.0
  %464 = vmatpush1.msra.mxu0 0.0
  %465 = vmatprep.subr.mxu0 0.0
  %466 = vmatpush1.msra.mxu0 0.0
  %467 = vmatprep.subr.mxu0 0.0
  %468 = vmatpush1.msra.mxu0 0.0
  %469 = vmatprep.subr.mxu0 0.0
  %470 = vmatpush1.msra.mxu0 0.0
  %471 = vmatprep.subr.mxu0 0.0
  %472 = vmatpush1.msra.mxu0 0.0
  %473 = vmatprep.subr.mxu0 0.0
  %474 = vmatpush1.msra.mxu0 0.0
  %475 = vmatprep.mubr.f32.mxu0 0.0
  %476 = vmatmul.mubr.f32.gmra.mrb[0].mxu0 %v409
  %v477 = vpop.f32.mrb[0].mxu0
  %v478 = vadd.f32 0.0, %v477
  %v479 = vpop.f32.mrb[0].mxu0
  %480 = vdwg.mxu0
  %v481 = vadd.f32 %v408, %v478
  %v482 = vsub.f32 0.0, %v481
  %v483 = vmul.f32 %v482, 1.442695
  %v484 = vpow.pop %v483
  %v485 = vadd.f32 %v484, 1.0
  %v486 = vrcp.pop %v485
  %v487 = vmul.f32 1.0, %v486
  %v488 = vtanh.pop %v481
  %v489 = vmul.f32 %v487, %v297
  %491 = vrot.lane.b32.xlu0 %v488, 64
  %v492 = vpop.permute.xlu0 %491
  %v494 = vmul.f32 %v487, %v492
  %496 = vrot.lane.b32.xlu0 %v494, 32
  %v497 = vpop.permute.xlu0 %496
  %v499 = vadd.f32 %v489, %v497
  %v500 = vtanh.pop %v499
  %502 = vrot.lane.b32.xlu0 %v500, 64
  %v503 = vpop.permute.xlu0 %502
  %v505 = vmul.f32 %v487, %v503
  %507 = vrot.lane.b32.xlu0 %v505, 32
  %v508 = vpop.permute.xlu0 %507
  %511 = vrot.lane.b32.xlu0 %v406, 64
  %v512 = vpop.permute.xlu0 %511
  %v514 = vsel %vm205, %v508, %v512
  %v516 = vsel %vm309, %v514, 0
  %518 = vmatprep.subr.mxu0 0.0
  %519 = vmatpush1.msra.mxu0 %v35
  %520 = vmatprep.subr.mxu0 0.0
  %521 = vmatpush1.msra.mxu0 %v36
  %522 = vmatprep.subr.mxu0 0.0
  %523 = vmatpush1.msra.mxu0 %v37
  %524 = vmatprep.subr.mxu0 0.0
  %525 = vmatpush1.msra.mxu0 %v38
  %526 = vmatprep.subr.mxu0 0.0
  %527 = vmatpush1.msra.mxu0 %v39
  %528 = vmatprep.subr.mxu0 0.0
  %529 = vmatpush1.msra.mxu0 %v40
  %530 = vmatprep.subr.mxu0 0.0
  %531 = vmatpush1.msra.mxu0 %v41
  %532 = vmatprep.subr.mxu0 0.0
  %533 = vmatpush1.msra.mxu0 %v42
  %534 = vmatprep.subr.mxu0 0.0
  %535 = vmatpush1.msra.mxu0 0.0
  %536 = vmatprep.subr.mxu0 0.0
  %537 = vmatpush1.msra.mxu0 0.0
  %538 = vmatprep.subr.mxu0 0.0
  %539 = vmatpush1.msra.mxu0 0.0
  %540 = vmatprep.subr.mxu0 0.0
  %541 = vmatpush1.msra.mxu0 0.0
  %542 = vmatprep.subr.mxu0 0.0
  %543 = vmatpush1.msra.mxu0 0.0
  %544 = vmatprep.subr.mxu0 0.0
  %545 = vmatpush1.msra.mxu0 0.0
  %546 = vmatprep.subr.mxu0 0.0
  %547 = vmatpush1.msra.mxu0 0.0
  %548 = vmatprep.subr.mxu0 0.0
  %549 = vmatpush1.msra.mxu0 0.0
  %550 = vmatprep.subr.mxu0 0.0
  %551 = vmatpush1.msra.mxu0 0.0
  %552 = vmatprep.subr.mxu0 0.0
  %553 = vmatpush1.msra.mxu0 0.0
  %554 = vmatprep.subr.mxu0 0.0
  %555 = vmatpush1.msra.mxu0 0.0
  %556 = vmatprep.subr.mxu0 0.0
  %557 = vmatpush1.msra.mxu0 0.0
  %558 = vmatprep.subr.mxu0 0.0
  %559 = vmatpush1.msra.mxu0 0.0
  %560 = vmatprep.subr.mxu0 0.0
  %561 = vmatpush1.msra.mxu0 0.0
  %562 = vmatprep.subr.mxu0 0.0
  %563 = vmatpush1.msra.mxu0 0.0
  %564 = vmatprep.subr.mxu0 0.0
  %565 = vmatpush1.msra.mxu0 0.0
  %566 = vmatprep.subr.mxu0 0.0
  %567 = vmatpush1.msra.mxu0 0.0
  %568 = vmatprep.subr.mxu0 0.0
  %569 = vmatpush1.msra.mxu0 0.0
  %570 = vmatprep.subr.mxu0 0.0
  %571 = vmatpush1.msra.mxu0 0.0
  %572 = vmatprep.subr.mxu0 0.0
  %573 = vmatpush1.msra.mxu0 0.0
  %574 = vmatprep.subr.mxu0 0.0
  %575 = vmatpush1.msra.mxu0 0.0
  %576 = vmatprep.subr.mxu0 0.0
  %577 = vmatpush1.msra.mxu0 0.0
  %578 = vmatprep.subr.mxu0 0.0
  %579 = vmatpush1.msra.mxu0 0.0
  %580 = vmatprep.subr.mxu0 0.0
  %581 = vmatpush1.msra.mxu0 0.0
  %582 = vmatprep.mubr.f32.mxu0 0.0
  %583 = vmatmul.mubr.f32.gmra.mrb[0].mxu0 %v516
  %v584 = vpop.f32.mrb[0].mxu0
  %v585 = vadd.f32 %v48, %v584
  %v586 = vpop.f32.mrb[0].mxu0
  %587 = vdwg.mxu0
  %v588 = vsub.f32 0.0, %v585
  %v589 = vmul.f32 %v588, 1.442695
  %v590 = vpow.pop %v589
  %v591 = vadd.f32 %v590, 1.0
  %v592 = vrcp.pop %v591
  %v593 = vmul.f32 1.0, %v592
  %v594 = vtanh.pop %v585
  %v595 = vmul.f32 %v593, %v400
  %597 = vrot.lane.b32.xlu0 %v594, 64
  %v598 = vpop.permute.xlu0 %597
  %v600 = vmul.f32 %v593, %v598
  %602 = vrot.lane.b32.xlu0 %v600, 32
  %v603 = vpop.permute.xlu0 %602
  %v605 = vadd.f32 %v595, %v603
  %v606 = vtanh.pop %v605
  %608 = vrot.lane.b32.xlu0 %v606, 64
  %v609 = vpop.permute.xlu0 %608
  %v611 = vmul.f32 %v593, %v609
  %s612 = scalar_lea.vmem [#allocation2], 16
  %v613 = vld [vmem:[%s612] sm:$0xff]
  %v614 = vsel %vm205, %v508, 0
  %616 = vmatprep.subr.mxu0 0.0
  %617 = vmatpush1.msra.mxu0 %v31
  %618 = vmatprep.subr.mxu0 0.0
  %619 = vmatpush1.msra.mxu0 %v32
  %620 = vmatprep.subr.mxu0 0.0
  %621 = vmatpush1.msra.mxu0 %v33
  %622 = vmatprep.subr.mxu0 0.0
  %623 = vmatpush1.msra.mxu0 %v34
  %624 = vmatprep.subr.mxu0 0.0
  %625 = vmatpush1.msra.mxu0 0.0
  %626 = vmatprep.subr.mxu0 0.0
  %627 = vmatpush1.msra.mxu0 0.0
  %628 = vmatprep.subr.mxu0 0.0
  %629 = vmatpush1.msra.mxu0 0.0
  %630 = vmatprep.subr.mxu0 0.0
  %631 = vmatpush1.msra.mxu0 0.0
  %632 = vmatprep.subr.mxu0 0.0
  %633 = vmatpush1.msra.mxu0 0.0
  %634 = vmatprep.subr.mxu0 0.0
  %635 = vmatpush1.msra.mxu0 0.0
  %636 = vmatprep.subr.mxu0 0.0
  %637 = vmatpush1.msra.mxu0 0.0
  %638 = vmatprep.subr.mxu0 0.0
  %639 = vmatpush1.msra.mxu0 0.0
  %640 = vmatprep.subr.mxu0 0.0
  %641 = vmatpush1.msra.mxu0 0.0
  %642 = vmatprep.subr.mxu0 0.0
  %643 = vmatpush1.msra.mxu0 0.0
  %644 = vmatprep.subr.mxu0 0.0
  %645 = vmatpush1.msra.mxu0 0.0
  %646 = vmatprep.subr.mxu0 0.0
  %647 = vmatpush1.msra.mxu0 0.0
  %648 = vmatprep.subr.mxu0 0.0
  %649 = vmatpush1.msra.mxu0 0.0
  %650 = vmatprep.subr.mxu0 0.0
  %651 = vmatpush1.msra.mxu0 0.0
  %652 = vmatprep.subr.mxu0 0.0
  %653 = vmatpush1.msra.mxu0 0.0
  %654 = vmatprep.subr.mxu0 0.0
  %655 = vmatpush1.msra.mxu0 0.0
  %656 = vmatprep.subr.mxu0 0.0
  %657 = vmatpush1.msra.mxu0 0.0
  %658 = vmatprep.subr.mxu0 0.0
  %659 = vmatpush1.msra.mxu0 0.0
  %660 = vmatprep.subr.mxu0 0.0
  %661 = vmatpush1.msra.mxu0 0.0
  %662 = vmatprep.subr.mxu0 0.0
  %663 = vmatpush1.msra.mxu0 0.0
  %664 = vmatprep.subr.mxu0 0.0
  %665 = vmatpush1.msra.mxu0 0.0
  %666 = vmatprep.subr.mxu0 0.0
  %667 = vmatpush1.msra.mxu0 0.0
  %668 = vmatprep.subr.mxu0 0.0
  %669 = vmatpush1.msra.mxu0 0.0
  %670 = vmatprep.subr.mxu0 0.0
  %671 = vmatpush1.msra.mxu0 0.0
  %672 = vmatprep.subr.mxu0 0.0
  %673 = vmatpush1.msra.mxu0 0.0
  %674 = vmatprep.subr.mxu0 0.0
  %675 = vmatpush1.msra.mxu0 0.0
  %676 = vmatprep.subr.mxu0 0.0
  %677 = vmatpush1.msra.mxu0 0.0
  %678 = vmatprep.subr.mxu0 0.0
  %679 = vmatpush1.msra.mxu0 0.0
  %680 = vmatprep.mubr.f32.mxu0 0.0
  %681 = vmatmul.mubr.f32.gmra.mrb[0].mxu0 %v614
  %v682 = vpop.f32.mrb[0].mxu0
  %v683 = vadd.f32 0.0, %v682
  %v684 = vpop.f32.mrb[0].mxu0
  %685 = vdwg.mxu0
  %v686 = vadd.f32 %v613, %v683
  %v687 = vsub.f32 0.0, %v686
  %v688 = vmul.f32 %v687, 1.442695
  %v689 = vpow.pop %v688
  %v690 = vadd.f32 %v689, 1.0
  %v691 = vrcp.pop %v690
  %v692 = vmul.f32 1.0, %v691
  %v693 = vtanh.pop %v686
  %v694 = vmul.f32 %v692, %v499
  %696 = vrot.lane.b32.xlu0 %v693, 64
  %v697 = vpop.permute.xlu0 %696
  %v699 = vmul.f32 %v692, %v697
  %701 = vrot.lane.b32.xlu0 %v699, 32
  %v702 = vpop.permute.xlu0 %701
  %v704 = vadd.f32 %v694, %v702
  %v705 = vtanh.pop %v704
  %707 = vrot.lane.b32.xlu0 %v705, 64
  %v708 = vpop.permute.xlu0 %707
  %v710 = vmul.f32 %v692, %v708
  %712 = vrot.lane.b32.xlu0 %v710, 32
  %v713 = vpop.permute.xlu0 %712
  %716 = vrot.lane.b32.xlu0 %v611, 64
  %v717 = vpop.permute.xlu0 %716
  %v719 = vsel %vm205, %v713, %v717
  %v721 = vsel %vm309, %v719, 0
  %723 = vmatprep.subr.mxu0 0.0
  %724 = vmatpush1.msra.mxu0 %v35
  %725 = vmatprep.subr.mxu0 0.0
  %726 = vmatpush1.msra.mxu0 %v36
  %727 = vmatprep.subr.mxu0 0.0
  %728 = vmatpush1.msra.mxu0 %v37
  %729 = vmatprep.subr.mxu0 0.0
  %730 = vmatpush1.msra.mxu0 %v38
  %731 = vmatprep.subr.mxu0 0.0
  %732 = vmatpush1.msra.mxu0 %v39
  %733 = vmatprep.subr.mxu0 0.0
  %734 = vmatpush1.msra.mxu0 %v40
  %735 = vmatprep.subr.mxu0 0.0
  %736 = vmatpush1.msra.mxu0 %v41
  %737 = vmatprep.subr.mxu0 0.0
  %738 = vmatpush1.msra.mxu0 %v42
  %739 = vmatprep.subr.mxu0 0.0
  %740 = vmatpush1.msra.mxu0 0.0
  %741 = vmatprep.subr.mxu0 0.0
  %742 = vmatpush1.msra.mxu0 0.0
  %743 = vmatprep.subr.mxu0 0.0
  %744 = vmatpush1.msra.mxu0 0.0
  %745 = vmatprep.subr.mxu0 0.0
  %746 = vmatpush1.msra.mxu0 0.0
  %747 = vmatprep.subr.mxu0 0.0
  %748 = vmatpush1.msra.mxu0 0.0
  %749 = vmatprep.subr.mxu0 0.0
  %750 = vmatpush1.msra.mxu0 0.0
  %751 = vmatprep.subr.mxu0 0.0
  %752 = vmatpush1.msra.mxu0 0.0
  %753 = vmatprep.subr.mxu0 0.0
  %754 = vmatpush1.msra.mxu0 0.0
  %755 = vmatprep.subr.mxu0 0.0
  %756 = vmatpush1.msra.mxu0 0.0
  %757 = vmatprep.subr.mxu0 0.0
  %758 = vmatpush1.msra.mxu0 0.0
  %759 = vmatprep.subr.mxu0 0.0
  %760 = vmatpush1.msra.mxu0 0.0
  %761 = vmatprep.subr.mxu0 0.0
  %762 = vmatpush1.msra.mxu0 0.0
  %763 = vmatprep.subr.mxu0 0.0
  %764 = vmatpush1.msra.mxu0 0.0
  %765 = vmatprep.subr.mxu0 0.0
  %766 = vmatpush1.msra.mxu0 0.0
  %767 = vmatprep.subr.mxu0 0.0
  %768 = vmatpush1.msra.mxu0 0.0
  %769 = vmatprep.subr.mxu0 0.0
  %770 = vmatpush1.msra.mxu0 0.0
  %771 = vmatprep.subr.mxu0 0.0
  %772 = vmatpush1.msra.mxu0 0.0
  %773 = vmatprep.subr.mxu0 0.0
  %774 = vmatpush1.msra.mxu0 0.0
  %775 = vmatprep.subr.mxu0 0.0
  %776 = vmatpush1.msra.mxu0 0.0
  %777 = vmatprep.subr.mxu0 0.0
  %778 = vmatpush1.msra.mxu0 0.0
  %779 = vmatprep.subr.mxu0 0.0
  %780 = vmatpush1.msra.mxu0 0.0
  %781 = vmatprep.subr.mxu0 0.0
  %782 = vmatpush1.msra.mxu0 0.0
  %783 = vmatprep.subr.mxu0 0.0
  %784 = vmatpush1.msra.mxu0 0.0
  %785 = vmatprep.subr.mxu0 0.0
  %786 = vmatpush1.msra.mxu0 0.0
  %787 = vmatprep.mubr.f32.mxu0 0.0
  %788 = vmatmul.mubr.f32.gmra.mrb[0].mxu0 %v721
  %v789 = vpop.f32.mrb[0].mxu0
  %v790 = vadd.f32 %v48, %v789
  %v791 = vpop.f32.mrb[0].mxu0
  %792 = vdwg.mxu0
  %v793 = vsub.f32 0.0, %v790
  %v794 = vmul.f32 %v793, 1.442695
  %v795 = vpow.pop %v794
  %v796 = vadd.f32 %v795, 1.0
  %v797 = vrcp.pop %v796
  %v798 = vmul.f32 1.0, %v797
  %v799 = vtanh.pop %v790
  %v800 = vmul.f32 %v798, %v605
  %802 = vrot.lane.b32.xlu0 %v799, 64
  %v803 = vpop.permute.xlu0 %802
  %v805 = vmul.f32 %v798, %v803
  %807 = vrot.lane.b32.xlu0 %v805, 32
  %v808 = vpop.permute.xlu0 %807
  %v810 = vadd.f32 %v800, %v808
  %v811 = vtanh.pop %v810
  %813 = vrot.lane.b32.xlu0 %v811, 64
  %v814 = vpop.permute.xlu0 %813
  %v816 = vmul.f32 %v798, %v814
  %s817 = scalar_lea.vmem [#allocation2], 24
  %v818 = vld [vmem:[%s817] sm:$0xff]
  %v819 = vsel %vm205, %v713, 0
  %821 = vmatprep.subr.mxu0 0.0
  %822 = vmatpush1.msra.mxu0 %v31
  %823 = vmatprep.subr.mxu0 0.0
  %824 = vmatpush1.msra.mxu0 %v32
  %825 = vmatprep.subr.mxu0 0.0
  %826 = vmatpush1.msra.mxu0 %v33
  %827 = vmatprep.subr.mxu0 0.0
  %828 = vmatpush1.msra.mxu0 %v34
  %829 = vmatprep.subr.mxu0 0.0
  %830 = vmatpush1.msra.mxu0 0.0
  %831 = vmatprep.subr.mxu0 0.0
  %832 = vmatpush1.msra.mxu0 0.0
  %833 = vmatprep.subr.mxu0 0.0
  %834 = vmatpush1.msra.mxu0 0.0
  %835 = vmatprep.subr.mxu0 0.0
  %836 = vmatpush1.msra.mxu0 0.0
  %837 = vmatprep.subr.mxu0 0.0
  %838 = vmatpush1.msra.mxu0 0.0
  %839 = vmatprep.subr.mxu0 0.0
  %840 = vmatpush1.msra.mxu0 0.0
  %841 = vmatprep.subr.mxu0 0.0
  %842 = vmatpush1.msra.mxu0 0.0
  %843 = vmatprep.subr.mxu0 0.0
  %844 = vmatpush1.msra.mxu0 0.0
  %845 = vmatprep.subr.mxu0 0.0
  %846 = vmatpush1.msra.mxu0 0.0
  %847 = vmatprep.subr.mxu0 0.0
  %848 = vmatpush1.msra.mxu0 0.0
  %849 = vmatprep.subr.mxu0 0.0
  %850 = vmatpush1.msra.mxu0 0.0
  %851 = vmatprep.subr.mxu0 0.0
  %852 = vmatpush1.msra.mxu0 0.0
  %853 = vmatprep.subr.mxu0 0.0
  %854 = vmatpush1.msra.mxu0 0.0
  %855 = vmatprep.subr.mxu0 0.0
  %856 = vmatpush1.msra.mxu0 0.0
  %857 = vmatprep.subr.mxu0 0.0
  %858 = vmatpush1.msra.mxu0 0.0
  %859 = vmatprep.subr.mxu0 0.0
  %860 = vmatpush1.msra.mxu0 0.0
  %861 = vmatprep.subr.mxu0 0.0
  %862 = vmatpush1.msra.mxu0 0.0
  %863 = vmatprep.subr.mxu0 0.0
  %864 = vmatpush1.msra.mxu0 0.0
  %865 = vmatprep.subr.mxu0 0.0
  %866 = vmatpush1.msra.mxu0 0.0
  %867 = vmatprep.subr.mxu0 0.0
  %868 = vmatpush1.msra.mxu0 0.0
  %869 = vmatprep.subr.mxu0 0.0
  %870 = vmatpush1.msra.mxu0 0.0
  %871 = vmatprep.subr.mxu0 0.0
  %872 = vmatpush1.msra.mxu0 0.0
  %873 = vmatprep.subr.mxu0 0.0
  %874 = vmatpush1.msra.mxu0 0.0
  %875 = vmatprep.subr.mxu0 0.0
  %876 = vmatpush1.msra.mxu0 0.0
  %877 = vmatprep.subr.mxu0 0.0
  %878 = vmatpush1.msra.mxu0 0.0
  %879 = vmatprep.subr.mxu0 0.0
  %880 = vmatpush1.msra.mxu0 0.0
  %881 = vmatprep.subr.mxu0 0.0
  %882 = vmatpush1.msra.mxu0 0.0
  %883 = vmatprep.subr.mxu0 0.0
  %884 = vmatpush1.msra.mxu0 0.0
  %885 = vmatprep.mubr.f32.mxu0 0.0
  %886 = vmatmul.mubr.f32.gmra.mrb[0].mxu0 %v819
  %v887 = vpop.f32.mrb[0].mxu0
  %v888 = vadd.f32 0.0, %v887
  %v889 = vpop.f32.mrb[0].mxu0
  %890 = vdwg.mxu0
  %v891 = vadd.f32 %v818, %v888
  %v892 = vsub.f32 0.0, %v891
  %v893 = vmul.f32 %v892, 1.442695
  %v894 = vpow.pop %v893
  %v895 = vadd.f32 %v894, 1.0
  %v896 = vrcp.pop %v895
  %v897 = vmul.f32 1.0, %v896
  %v898 = vtanh.pop %v891
  %v899 = vmul.f32 %v897, %v704
  %901 = vrot.lane.b32.xlu0 %v898, 64
  %v902 = vpop.permute.xlu0 %901
  %v904 = vmul.f32 %v897, %v902
  %906 = vrot.lane.b32.xlu0 %v904, 32
  %v907 = vpop.permute.xlu0 %906
  %v909 = vadd.f32 %v899, %v907
  %v910 = vtanh.pop %v909
  %912 = vrot.lane.b32.xlu0 %v910, 64
  %v913 = vpop.permute.xlu0 %912
  %v915 = vmul.f32 %v897, %v913
  %917 = vrot.lane.b32.xlu0 %v915, 32
  %v918 = vpop.permute.xlu0 %917
  %921 = vrot.lane.b32.xlu0 %v816, 64
  %v922 = vpop.permute.xlu0 %921
  %v924 = vsel %vm205, %v918, %v922
  %v926 = vsel %vm309, %v924, 0
  %928 = vmatprep.subr.mxu0 0.0
  %929 = vmatpush1.msra.mxu0 %v35
  %930 = vmatprep.subr.mxu0 0.0
  %931 = vmatpush1.msra.mxu0 %v36
  %932 = vmatprep.subr.mxu0 0.0
  %933 = vmatpush1.msra.mxu0 %v37
  %934 = vmatprep.subr.mxu0 0.0
  %935 = vmatpush1.msra.mxu0 %v38
  %936 = vmatprep.subr.mxu0 0.0
  %937 = vmatpush1.msra.mxu0 %v39
  %938 = vmatprep.subr.mxu0 0.0
  %939 = vmatpush1.msra.mxu0 %v40
  %940 = vmatprep.subr.mxu0 0.0
  %941 = vmatpush1.msra.mxu0 %v41
  %942 = vmatprep.subr.mxu0 0.0
  %943 = vmatpush1.msra.mxu0 %v42
  %944 = vmatprep.subr.mxu0 0.0
  %945 = vmatpush1.msra.mxu0 0.0
  %946 = vmatprep.subr.mxu0 0.0
  %947 = vmatpush1.msra.mxu0 0.0
  %948 = vmatprep.subr.mxu0 0.0
  %949 = vmatpush1.msra.mxu0 0.0
  %950 = vmatprep.subr.mxu0 0.0
  %951 = vmatpush1.msra.mxu0 0.0
  %952 = vmatprep.subr.mxu0 0.0
  %953 = vmatpush1.msra.mxu0 0.0
  %954 = vmatprep.subr.mxu0 0.0
  %955 = vmatpush1.msra.mxu0 0.0
  %956 = vmatprep.subr.mxu0 0.0
  %957 = vmatpush1.msra.mxu0 0.0
  %958 = vmatprep.subr.mxu0 0.0
  %959 = vmatpush1.msra.mxu0 0.0
  %960 = vmatprep.subr.mxu0 0.0
  %961 = vmatpush1.msra.mxu0 0.0
  %962 = vmatprep.subr.mxu0 0.0
  %963 = vmatpush1.msra.mxu0 0.0
  %964 = vmatprep.subr.mxu0 0.0
  %965 = vmatpush1.msra.mxu0 0.0
  %966 = vmatprep.subr.mxu0 0.0
  %967 = vmatpush1.msra.mxu0 0.0
  %968 = vmatprep.subr.mxu0 0.0
  %969 = vmatpush1.msra.mxu0 0.0
  %970 = vmatprep.subr.mxu0 0.0
  %971 = vmatpush1.msra.mxu0 0.0
  %972 = vmatprep.subr.mxu0 0.0
  %973 = vmatpush1.msra.mxu0 0.0
  %974 = vmatprep.subr.mxu0 0.0
  %975 = vmatpush1.msra.mxu0 0.0
  %976 = vmatprep.subr.mxu0 0.0
  %977 = vmatpush1.msra.mxu0 0.0
  %978 = vmatprep.subr.mxu0 0.0
  %979 = vmatpush1.msra.mxu0 0.0
  %980 = vmatprep.subr.mxu0 0.0
  %981 = vmatpush1.msra.mxu0 0.0
  %982 = vmatprep.subr.mxu0 0.0
  %983 = vmatpush1.msra.mxu0 0.0
  %984 = vmatprep.subr.mxu0 0.0
  %985 = vmatpush1.msra.mxu0 0.0
  %986 = vmatprep.subr.mxu0 0.0
  %987 = vmatpush1.msra.mxu0 0.0
  %988 = vmatprep.subr.mxu0 0.0
  %989 = vmatpush1.msra.mxu0 0.0
  %990 = vmatprep.subr.mxu0 0.0
  %991 = vmatpush1.msra.mxu0 0.0
  %992 = vmatprep.mubr.f32.mxu0 0.0
  %993 = vmatmul.mubr.f32.gmra.mrb[0].mxu0 %v926
  %v994 = vpop.f32.mrb[0].mxu0
  %v995 = vadd.f32 %v48, %v994
  %v996 = vpop.f32.mrb[0].mxu0
  %997 = vdwg.mxu0
  %v998 = vsub.f32 0.0, %v995
  %v999 = vmul.f32 %v998, 1.442695
  %v1000 = vpow.pop %v999
  %v1001 = vadd.f32 %v1000, 1.0
  %v1002 = vrcp.pop %v1001
  %v1003 = vmul.f32 1.0, %v1002
  %v1004 = vtanh.pop %v995
  %v1005 = vmul.f32 %v1003, %v810
  %1007 = vrot.lane.b32.xlu0 %v1004, 64
  %v1008 = vpop.permute.xlu0 %1007
  %v1010 = vmul.f32 %v1003, %v1008
  %1012 = vrot.lane.b32.xlu0 %v1010, 32
  %v1013 = vpop.permute.xlu0 %1012
  %v1015 = vadd.f32 %v1005, %v1013
  %v1016 = vtanh.pop %v1015
  %1018 = vrot.lane.b32.xlu0 %v1016, 64
  %v1019 = vpop.permute.xlu0 %1018
  %v1021 = vmul.f32 %v1003, %v1019
  %s1022 = scalar_lea.vmem [#allocation2], 32
  %v1023 = vld [vmem:[%s1022] sm:$0xff]
  %v1024 = vsel %vm205, %v918, 0
  %1026 = vmatprep.subr.mxu0 0.0
  %1027 = vmatpush1.msra.mxu0 %v31
  %1028 = vmatprep.subr.mxu0 0.0
  %1029 = vmatpush1.msra.mxu0 %v32
  %1030 = vmatprep.subr.mxu0 0.0
  %1031 = vmatpush1.msra.mxu0 %v33
  %1032 = vmatprep.subr.mxu0 0.0
  %1033 = vmatpush1.msra.mxu0 %v34
  %1034 = vmatprep.subr.mxu0 0.0
  %1035 = vmatpush1.msra.mxu0 0.0
  %1036 = vmatprep.subr.mxu0 0.0
  %1037 = vmatpush1.msra.mxu0 0.0
  %1038 = vmatprep.subr.mxu0 0.0
  %1039 = vmatpush1.msra.mxu0 0.0
  %1040 = vmatprep.subr.mxu0 0.0
  %1041 = vmatpush1.msra.mxu0 0.0
  %1042 = vmatprep.subr.mxu0 0.0
  %1043 = vmatpush1.msra.mxu0 0.0
  %1044 = vmatprep.subr.mxu0 0.0
  %1045 = vmatpush1.msra.mxu0 0.0
  %1046 = vmatprep.subr.mxu0 0.0
  %1047 = vmatpush1.msra.mxu0 0.0
  %1048 = vmatprep.subr.mxu0 0.0
  %1049 = vmatpush1.msra.mxu0 0.0
  %1050 = vmatprep.subr.mxu0 0.0
  %1051 = vmatpush1.msra.mxu0 0.0
  %1052 = vmatprep.subr.mxu0 0.0
  %1053 = vmatpush1.msra.mxu0 0.0
  %1054 = vmatprep.subr.mxu0 0.0
  %1055 = vmatpush1.msra.mxu0 0.0
  %1056 = vmatprep.subr.mxu0 0.0
  %1057 = vmatpush1.msra.mxu0 0.0
  %1058 = vmatprep.subr.mxu0 0.0
  %1059 = vmatpush1.msra.mxu0 0.0
  %1060 = vmatprep.subr.mxu0 0.0
  %1061 = vmatpush1.msra.mxu0 0.0
  %1062 = vmatprep.subr.mxu0 0.0
  %1063 = vmatpush1.msra.mxu0 0.0
  %1064 = vmatprep.subr.mxu0 0.0
  %1065 = vmatpush1.msra.mxu0 0.0
  %1066 = vmatprep.subr.mxu0 0.0
  %1067 = vmatpush1.msra.mxu0 0.0
  %1068 = vmatprep.subr.mxu0 0.0
  %1069 = vmatpush1.msra.mxu0 0.0
  %1070 = vmatprep.subr.mxu0 0.0
  %1071 = vmatpush1.msra.mxu0 0.0
  %1072 = vmatprep.subr.mxu0 0.0
  %1073 = vmatpush1.msra.mxu0 0.0
  %1074 = vmatprep.subr.mxu0 0.0
  %1075 = vmatpush1.msra.mxu0 0.0
  %1076 = vmatprep.subr.mxu0 0.0
  %1077 = vmatpush1.msra.mxu0 0.0
  %1078 = vmatprep.subr.mxu0 0.0
  %1079 = vmatpush1.msra.mxu0 0.0
  %1080 = vmatprep.subr.mxu0 0.0
  %1081 = vmatpush1.msra.mxu0 0.0
  %1082 = vmatprep.subr.mxu0 0.0
  %1083 = vmatpush1.msra.mxu0 0.0
  %1084 = vmatprep.subr.mxu0 0.0
  %1085 = vmatpush1.msra.mxu0 0.0
  %1086 = vmatprep.subr.mxu0 0.0
  %1087 = vmatpush1.msra.mxu0 0.0
  %1088 = vmatprep.subr.mxu0 0.0
  %1089 = vmatpush1.msra.mxu0 0.0
  %1090 = vmatprep.mubr.f32.mxu0 0.0
  %1091 = vmatmul.mubr.f32.gmra.mrb[0].mxu0 %v1024
  %v1092 = vpop.f32.mrb[0].mxu0
  %v1093 = vadd.f32 0.0, %v1092
  %v1094 = vpop.f32.mrb[0].mxu0
  %1095 = vdwg.mxu0
  %v1096 = vadd.f32 %v1023, %v1093
  %v1097 = vsub.f32 0.0, %v1096
  %v1098 = vmul.f32 %v1097, 1.442695
  %v1099 = vpow.pop %v1098
  %v1100 = vadd.f32 %v1099, 1.0
  %v1101 = vrcp.pop %v1100
  %v1102 = vmul.f32 1.0, %v1101
  %v1103 = vtanh.pop %v1096
  %v1104 = vmul.f32 %v1102, %v909
  %1106 = vrot.lane.b32.xlu0 %v1103, 64
  %v1107 = vpop.permute.xlu0 %1106
  %v1109 = vmul.f32 %v1102, %v1107
  %1111 = vrot.lane.b32.xlu0 %v1109, 32
  %v1112 = vpop.permute.xlu0 %1111
  %v1114 = vadd.f32 %v1104, %v1112
  %v1115 = vtanh.pop %v1114
  %1117 = vrot.lane.b32.xlu0 %v1115, 64
  %v1118 = vpop.permute.xlu0 %1117
  %v1120 = vmul.f32 %v1102, %v1118
  %1122 = vrot.lane.b32.xlu0 %v1120, 32
  %v1123 = vpop.permute.xlu0 %1122
  %1126 = vrot.lane.b32.xlu0 %v1021, 64
  %v1127 = vpop.permute.xlu0 %1126
  %v1129 = vsel %vm205, %v1123, %v1127
  %v1131 = vsel %vm309, %v1129, 0
  %1133 = vmatprep.subr.mxu0 0.0
  %1134 = vmatpush1.msra.mxu0 %v35
  %1135 = vmatprep.subr.mxu0 0.0
  %1136 = vmatpush1.msra.mxu0 %v36
  %1137 = vmatprep.subr.mxu0 0.0
  %1138 = vmatpush1.msra.mxu0 %v37
  %1139 = vmatprep.subr.mxu0 0.0
  %1140 = vmatpush1.msra.mxu0 %v38
  %1141 = vmatprep.subr.mxu0 0.0
  %1142 = vmatpush1.msra.mxu0 %v39
  %1143 = vmatprep.subr.mxu0 0.0
  %1144 = vmatpush1.msra.mxu0 %v40
  %1145 = vmatprep.subr.mxu0 0.0
  %1146 = vmatpush1.msra.mxu0 %v41
  %1147 = vmatprep.subr.mxu0 0.0
  %1148 = vmatpush1.msra.mxu0 %v42
  %1149 = vmatprep.subr.mxu0 0.0
  %1150 = vmatpush1.msra.mxu0 0.0
  %1151 = vmatprep.subr.mxu0 0.0
  %1152 = vmatpush1.msra.mxu0 0.0
  %1153 = vmatprep.subr.mxu0 0.0
  %1154 = vmatpush1.msra.mxu0 0.0
  %1155 = vmatprep.subr.mxu0 0.0
  %1156 = vmatpush1.msra.mxu0 0.0
  %1157 = vmatprep.subr.mxu0 0.0
  %1158 = vmatpush1.msra.mxu0 0.0
  %1159 = vmatprep.subr.mxu0 0.0
  %1160 = vmatpush1.msra.mxu0 0.0
  %1161 = vmatprep.subr.mxu0 0.0
  %1162 = vmatpush1.msra.mxu0 0.0
  %1163 = vmatprep.subr.mxu0 0.0
  %1164 = vmatpush1.msra.mxu0 0.0
  %1165 = vmatprep.subr.mxu0 0.0
  %1166 = vmatpush1.msra.mxu0 0.0
  %1167 = vmatprep.subr.mxu0 0.0
  %1168 = vmatpush1.msra.mxu0 0.0
  %1169 = vmatprep.subr.mxu0 0.0
  %1170 = vmatpush1.msra.mxu0 0.0
  %1171 = vmatprep.subr.mxu0 0.0
  %1172 = vmatpush1.msra.mxu0 0.0
  %1173 = vmatprep.subr.mxu0 0.0
  %1174 = vmatpush1.msra.mxu0 0.0
  %1175 = vmatprep.subr.mxu0 0.0
  %1176 = vmatpush1.msra.mxu0 0.0
  %1177 = vmatprep.subr.mxu0 0.0
  %1178 = vmatpush1.msra.mxu0 0.0
  %1179 = vmatprep.subr.mxu0 0.0
  %1180 = vmatpush1.msra.mxu0 0.0
  %1181 = vmatprep.subr.mxu0 0.0
  %1182 = vmatpush1.msra.mxu0 0.0
  %1183 = vmatprep.subr.mxu0 0.0
  %1184 = vmatpush1.msra.mxu0 0.0
  %1185 = vmatprep.subr.mxu0 0.0
  %1186 = vmatpush1.msra.mxu0 0.0
  %1187 = vmatprep.subr.mxu0 0.0
  %1188 = vmatpush1.msra.mxu0 0.0
  %1189 = vmatprep.subr.mxu0 0.0
  %1190 = vmatpush1.msra.mxu0 0.0
  %1191 = vmatprep.subr.mxu0 0.0
  %1192 = vmatpush1.msra.mxu0 0.0
  %1193 = vmatprep.subr.mxu0 0.0
  %1194 = vmatpush1.msra.mxu0 0.0
  %1195 = vmatprep.subr.mxu0 0.0
  %1196 = vmatpush1.msra.mxu0 0.0
  %1197 = vmatprep.mubr.f32.mxu0 0.0
  %1198 = vmatmul.mubr.f32.gmra.mrb[0].mxu0 %v1131
  %v1199 = vpop.f32.mrb[0].mxu0
  %v1200 = vadd.f32 %v48, %v1199
  %v1201 = vpop.f32.mrb[0].mxu0
  %1202 = vdwg.mxu0
  %v1203 = vsub.f32 0.0, %v1200
  %v1204 = vmul.f32 %v1203, 1.442695
  %v1205 = vpow.pop %v1204
  %v1206 = vadd.f32 %v1205, 1.0
  %v1207 = vrcp.pop %v1206
  %v1208 = vmul.f32 1.0, %v1207
  %v1209 = vtanh.pop %v1200
  %v1210 = vmul.f32 %v1208, %v1015
  %1212 = vrot.lane.b32.xlu0 %v1209, 64
  %v1213 = vpop.permute.xlu0 %1212
  %v1215 = vmul.f32 %v1208, %v1213
  %1217 = vrot.lane.b32.xlu0 %v1215, 32
  %v1218 = vpop.permute.xlu0 %1217
  %v1220 = vadd.f32 %v1210, %v1218
  %v1221 = vtanh.pop %v1220
  %1223 = vrot.lane.b32.xlu0 %v1221, 64
  %v1224 = vpop.permute.xlu0 %1223
  %v1226 = vmul.f32 %v1208, %v1224
  %s1227 = scalar_lea.vmem [#allocation2], 40
  %v1228 = vld [vmem:[%s1227] sm:$0xff]
  %v1229 = vsel %vm205, %v1123, 0
  %1231 = vmatprep.subr.mxu0 0.0
  %1232 = vmatpush1.msra.mxu0 %v31
  %1233 = vmatprep.subr.mxu0 0.0
  %1234 = vmatpush1.msra.mxu0 %v32
  %1235 = vmatprep.subr.mxu0 0.0
  %1236 = vmatpush1.msra.mxu0 %v33
  %1237 = vmatprep.subr.mxu0 0.0
  %1238 = vmatpush1.msra.mxu0 %v34
  %1239 = vmatprep.subr.mxu0 0.0
  %1240 = vmatpush1.msra.mxu0 0.0
  %1241 = vmatprep.subr.mxu0 0.0
  %1242 = vmatpush1.msra.mxu0 0.0
  %1243 = vmatprep.subr.mxu0 0.0
  %1244 = vmatpush1.msra.mxu0 0.0
  %1245 = vmatprep.subr.mxu0 0.0
  %1246 = vmatpush1.msra.mxu0 0.0
  %1247 = vmatprep.subr.mxu0 0.0
  %1248 = vmatpush1.msra.mxu0 0.0
  %1249 = vmatprep.subr.mxu0 0.0
  %1250 = vmatpush1.msra.mxu0 0.0
  %1251 = vmatprep.subr.mxu0 0.0
  %1252 = vmatpush1.msra.mxu0 0.0
  %1253 = vmatprep.subr.mxu0 0.0
  %1254 = vmatpush1.msra.mxu0 0.0
  %1255 = vmatprep.subr.mxu0 0.0
  %1256 = vmatpush1.msra.mxu0 0.0
  %1257 = vmatprep.subr.mxu0 0.0
  %1258 = vmatpush1.msra.mxu0 0.0
  %1259 = vmatprep.subr.mxu0 0.0
  %1260 = vmatpush1.msra.mxu0 0.0
  %1261 = vmatprep.subr.mxu0 0.0
  %1262 = vmatpush1.msra.mxu0 0.0
  %1263 = vmatprep.subr.mxu0 0.0
  %1264 = vmatpush1.msra.mxu0 0.0
  %1265 = vmatprep.subr.mxu0 0.0
  %1266 = vmatpush1.msra.mxu0 0.0
  %1267 = vmatprep.subr.mxu0 0.0
  %1268 = vmatpush1.msra.mxu0 0.0
  %1269 = vmatprep.subr.mxu0 0.0
  %1270 = vmatpush1.msra.mxu0 0.0
  %1271 = vmatprep.subr.mxu0 0.0
  %1272 = vmatpush1.msra.mxu0 0.0
  %1273 = vmatprep.subr.mxu0 0.0
  %1274 = vmatpush1.msra.mxu0 0.0
  %1275 = vmatprep.subr.mxu0 0.0
  %1276 = vmatpush1.msra.mxu0 0.0
  %1277 = vmatprep.subr.mxu0 0.0
  %1278 = vmatpush1.msra.mxu0 0.0
  %1279 = vmatprep.subr.mxu0 0.0
  %1280 = vmatpush1.msra.mxu0 0.0
  %1281 = vmatprep.subr.mxu0 0.0
  %1282 = vmatpush1.msra.mxu0 0.0
  %1283 = vmatprep.subr.mxu0 0.0
  %1284 = vmatpush1.msra.mxu0 0.0
  %1285 = vmatprep.subr.mxu0 0.0
  %1286 = vmatpush1.msra.mxu0 0.0
  %1287 = vmatprep.subr.mxu0 0.0
  %1288 = vmatpush1.msra.mxu0 0.0
  %1289 = vmatprep.subr.mxu0 0.0
  %1290 = vmatpush1.msra.mxu0 0.0
  %1291 = vmatprep.subr.mxu0 0.0
  %1292 = vmatpush1.msra.mxu0 0.0
  %1293 = vmatprep.subr.mxu0 0.0
  %1294 = vmatpush1.msra.mxu0 0.0
  %1295 = vmatprep.mubr.f32.mxu0 0.0
  %1296 = vmatmul.mubr.f32.gmra.mrb[0].mxu0 %v1229
  %v1297 = vpop.f32.mrb[0].mxu0
  %v1298 = vadd.f32 0.0, %v1297
  %v1299 = vpop.f32.mrb[0].mxu0
  %1300 = vdwg.mxu0
  %v1301 = vadd.f32 %v1228, %v1298
  %v1302 = vsub.f32 0.0, %v1301
  %v1303 = vmul.f32 %v1302, 1.442695
  %v1304 = vpow.pop %v1303
  %v1305 = vadd.f32 %v1304, 1.0
  %v1306 = vrcp.pop %v1305
  %v1307 = vmul.f32 1.0, %v1306
  %v1308 = vtanh.pop %v1301
  %v1309 = vmul.f32 %v1307, %v1114
  %1311 = vrot.lane.b32.xlu0 %v1308, 64
  %v1312 = vpop.permute.xlu0 %1311
  %v1314 = vmul.f32 %v1307, %v1312
  %1316 = vrot.lane.b32.xlu0 %v1314, 32
  %v1317 = vpop.permute.xlu0 %1316
  %v1319 = vadd.f32 %v1309, %v1317
  %v1320 = vtanh.pop %v1319
  %1322 = vrot.lane.b32.xlu0 %v1320, 64
  %v1323 = vpop.permute.xlu0 %1322
  %v1325 = vmul.f32 %v1307, %v1323
  %1327 = vrot.lane.b32.xlu0 %v1325, 32
  %v1328 = vpop.permute.xlu0 %1327
  %1331 = vrot.lane.b32.xlu0 %v1226, 64
  %v1332 = vpop.permute.xlu0 %1331
  %v1334 = vsel %vm205, %v1328, %v1332
  %v1336 = vsel %vm309, %v1334, 0
  %1338 = vmatprep.subr.mxu0 0.0
  %1339 = vmatpush1.msra.mxu0 %v35
  %1340 = vmatprep.subr.mxu0 0.0
  %1341 = vmatpush1.msra.mxu0 %v36
  %1342 = vmatprep.subr.mxu0 0.0
  %1343 = vmatpush1.msra.mxu0 %v37
  %1344 = vmatprep.subr.mxu0 0.0
  %1345 = vmatpush1.msra.mxu0 %v38
  %1346 = vmatprep.subr.mxu0 0.0
  %1347 = vmatpush1.msra.mxu0 %v39
  %1348 = vmatprep.subr.mxu0 0.0
  %1349 = vmatpush1.msra.mxu0 %v40
  %1350 = vmatprep.subr.mxu0 0.0
  %1351 = vmatpush1.msra.mxu0 %v41
  %1352 = vmatprep.subr.mxu0 0.0
  %1353 = vmatpush1.msra.mxu0 %v42
  %1354 = vmatprep.subr.mxu0 0.0
  %1355 = vmatpush1.msra.mxu0 0.0
  %1356 = vmatprep.subr.mxu0 0.0
  %1357 = vmatpush1.msra.mxu0 0.0
  %1358 = vmatprep.subr.mxu0 0.0
  %1359 = vmatpush1.msra.mxu0 0.0
  %1360 = vmatprep.subr.mxu0 0.0
  %1361 = vmatpush1.msra.mxu0 0.0
  %1362 = vmatprep.subr.mxu0 0.0
  %1363 = vmatpush1.msra.mxu0 0.0
  %1364 = vmatprep.subr.mxu0 0.0
  %1365 = vmatpush1.msra.mxu0 0.0
  %1366 = vmatprep.subr.mxu0 0.0
  %1367 = vmatpush1.msra.mxu0 0.0
  %1368 = vmatprep.subr.mxu0 0.0
  %1369 = vmatpush1.msra.mxu0 0.0
  %1370 = vmatprep.subr.mxu0 0.0
  %1371 = vmatpush1.msra.mxu0 0.0
  %1372 = vmatprep.subr.mxu0 0.0
  %1373 = vmatpush1.msra.mxu0 0.0
  %1374 = vmatprep.subr.mxu0 0.0
  %1375 = vmatpush1.msra.mxu0 0.0
  %1376 = vmatprep.subr.mxu0 0.0
  %1377 = vmatpush1.msra.mxu0 0.0
  %1378 = vmatprep.subr.mxu0 0.0
  %1379 = vmatpush1.msra.mxu0 0.0
  %1380 = vmatprep.subr.mxu0 0.0
  %1381 = vmatpush1.msra.mxu0 0.0
  %1382 = vmatprep.subr.mxu0 0.0
  %1383 = vmatpush1.msra.mxu0 0.0
  %1384 = vmatprep.subr.mxu0 0.0
  %1385 = vmatpush1.msra.mxu0 0.0
  %1386 = vmatprep.subr.mxu0 0.0
  %1387 = vmatpush1.msra.mxu0 0.0
  %1388 = vmatprep.subr.mxu0 0.0
  %1389 = vmatpush1.msra.mxu0 0.0
  %1390 = vmatprep.subr.mxu0 0.0
  %1391 = vmatpush1.msra.mxu0 0.0
  %1392 = vmatprep.subr.mxu0 0.0
  %1393 = vmatpush1.msra.mxu0 0.0
  %1394 = vmatprep.subr.mxu0 0.0
  %1395 = vmatpush1.msra.mxu0 0.0
  %1396 = vmatprep.subr.mxu0 0.0
  %1397 = vmatpush1.msra.mxu0 0.0
  %1398 = vmatprep.subr.mxu0 0.0
  %1399 = vmatpush1.msra.mxu0 0.0
  %1400 = vmatprep.subr.mxu0 0.0
  %1401 = vmatpush1.msra.mxu0 0.0
  %1402 = vmatprep.mubr.f32.mxu0 0.0
  %1403 = vmatmul.mubr.f32.gmra.mrb[0].mxu0 %v1336
  %v1404 = vpop.f32.mrb[0].mxu0
  %v1405 = vadd.f32 %v48, %v1404
  %v1406 = vpop.f32.mrb[0].mxu0
  %1407 = vdwg.mxu0
  %v1408 = vsub.f32 0.0, %v1405
  %v1409 = vmul.f32 %v1408, 1.442695
  %v1410 = vpow.pop %v1409
  %v1411 = vadd.f32 %v1410, 1.0
  %v1412 = vrcp.pop %v1411
  %v1413 = vmul.f32 1.0, %v1412
  %v1414 = vtanh.pop %v1405
  %v1415 = vmul.f32 %v1413, %v1220
  %1417 = vrot.lane.b32.xlu0 %v1414, 64
  %v1418 = vpop.permute.xlu0 %1417
  %v1420 = vmul.f32 %v1413, %v1418
  %1422 = vrot.lane.b32.xlu0 %v1420, 32
  %v1423 = vpop.permute.xlu0 %1422
  %v1425 = vadd.f32 %v1415, %v1423
  %v1426 = vtanh.pop %v1425
  %1428 = vrot.lane.b32.xlu0 %v1426, 64
  %v1429 = vpop.permute.xlu0 %1428
  %v1431 = vmul.f32 %v1413, %v1429
  %s1432 = scalar_lea.vmem [#allocation2], 48
  %v1433 = vld [vmem:[%s1432] sm:$0xff]
  %v1434 = vsel %vm205, %v1328, 0
  %1436 = vmatprep.subr.mxu0 0.0
  %1437 = vmatpush1.msra.mxu0 %v31
  %1438 = vmatprep.subr.mxu0 0.0
  %1439 = vmatpush1.msra.mxu0 %v32
  %1440 = vmatprep.subr.mxu0 0.0
  %1441 = vmatpush1.msra.mxu0 %v33
  %1442 = vmatprep.subr.mxu0 0.0
  %1443 = vmatpush1.msra.mxu0 %v34
  %1444 = vmatprep.subr.mxu0 0.0
  %1445 = vmatpush1.msra.mxu0 0.0
  %1446 = vmatprep.subr.mxu0 0.0
  %1447 = vmatpush1.msra.mxu0 0.0
  %1448 = vmatprep.subr.mxu0 0.0
  %1449 = vmatpush1.msra.mxu0 0.0
  %1450 = vmatprep.subr.mxu0 0.0
  %1451 = vmatpush1.msra.mxu0 0.0
  %1452 = vmatprep.subr.mxu0 0.0
  %1453 = vmatpush1.msra.mxu0 0.0
  %1454 = vmatprep.subr.mxu0 0.0
  %1455 = vmatpush1.msra.mxu0 0.0
  %1456 = vmatprep.subr.mxu0 0.0
  %1457 = vmatpush1.msra.mxu0 0.0
  %1458 = vmatprep.subr.mxu0 0.0
  %1459 = vmatpush1.msra.mxu0 0.0
  %1460 = vmatprep.subr.mxu0 0.0
  %1461 = vmatpush1.msra.mxu0 0.0
  %1462 = vmatprep.subr.mxu0 0.0
  %1463 = vmatpush1.msra.mxu0 0.0
  %1464 = vmatprep.subr.mxu0 0.0
  %1465 = vmatpush1.msra.mxu0 0.0
  %1466 = vmatprep.subr.mxu0 0.0
  %1467 = vmatpush1.msra.mxu0 0.0
  %1468 = vmatprep.subr.mxu0 0.0
  %1469 = vmatpush1.msra.mxu0 0.0
  %1470 = vmatprep.subr.mxu0 0.0
  %1471 = vmatpush1.msra.mxu0 0.0
  %1472 = vmatprep.subr.mxu0 0.0
  %1473 = vmatpush1.msra.mxu0 0.0
  %1474 = vmatprep.subr.mxu0 0.0
  %1475 = vmatpush1.msra.mxu0 0.0
  %1476 = vmatprep.subr.mxu0 0.0
  %1477 = vmatpush1.msra.mxu0 0.0
  %1478 = vmatprep.subr.mxu0 0.0
  %1479 = vmatpush1.msra.mxu0 0.0
  %1480 = vmatprep.subr.mxu0 0.0
  %1481 = vmatpush1.msra.mxu0 0.0
  %1482 = vmatprep.subr.mxu0 0.0
  %1483 = vmatpush1.msra.mxu0 0.0
  %1484 = vmatprep.subr.mxu0 0.0
  %1485 = vmatpush1.msra.mxu0 0.0
  %1486 = vmatprep.subr.mxu0 0.0
  %1487 = vmatpush1.msra.mxu0 0.0
  %1488 = vmatprep.subr.mxu0 0.0
  %1489 = vmatpush1.msra.mxu0 0.0
  %1490 = vmatprep.subr.mxu0 0.0
  %1491 = vmatpush1.msra.mxu0 0.0
  %1492 = vmatprep.subr.mxu0 0.0
  %1493 = vmatpush1.msra.mxu0 0.0
  %1494 = vmatprep.subr.mxu0 0.0
  %1495 = vmatpush1.msra.mxu0 0.0
  %1496 = vmatprep.subr.mxu0 0.0
  %1497 = vmatpush1.msra.mxu0 0.0
  %1498 = vmatprep.subr.mxu0 0.0
  %1499 = vmatpush1.msra.mxu0 0.0
  %1500 = vmatprep.mubr.f32.mxu0 0.0
  %1501 = vmatmul.mubr.f32.gmra.mrb[0].mxu0 %v1434
  %v1502 = vpop.f32.mrb[0].mxu0
  %v1503 = vadd.f32 0.0, %v1502
  %v1504 = vpop.f32.mrb[0].mxu0
  %1505 = vdwg.mxu0
  %v1506 = vadd.f32 %v1433, %v1503
  %v1507 = vsub.f32 0.0, %v1506
  %v1508 = vmul.f32 %v1507, 1.442695
  %v1509 = vpow.pop %v1508
  %v1510 = vadd.f32 %v1509, 1.0
  %v1511 = vrcp.pop %v1510
  %v1512 = vmul.f32 1.0, %v1511
  %v1513 = vtanh.pop %v1506
  %v1514 = vmul.f32 %v1512, %v1319
  %1516 = vrot.lane.b32.xlu0 %v1513, 64
  %v1517 = vpop.permute.xlu0 %1516
  %v1519 = vmul.f32 %v1512, %v1517
  %1521 = vrot.lane.b32.xlu0 %v1519, 32
  %v1522 = vpop.permute.xlu0 %1521
  %v1524 = vadd.f32 %v1514, %v1522
  %v1525 = vtanh.pop %v1524
  %1527 = vrot.lane.b32.xlu0 %v1525, 64
  %v1528 = vpop.permute.xlu0 %1527
  %v1530 = vmul.f32 %v1512, %v1528
  %1532 = vrot.lane.b32.xlu0 %v1530, 32
  %v1533 = vpop.permute.xlu0 %1532
  %1536 = vrot.lane.b32.xlu0 %v1431, 64
  %v1537 = vpop.permute.xlu0 %1536
  %v1539 = vsel %vm205, %v1533, %v1537
  %v1541 = vsel %vm309, %v1539, 0
  %1543 = vmatprep.subr.mxu0 0.0
  %1544 = vmatpush1.msra.mxu0 %v35
  %1545 = vmatprep.subr.mxu0 0.0
  %1546 = vmatpush1.msra.mxu0 %v36
  %1547 = vmatprep.subr.mxu0 0.0
  %1548 = vmatpush1.msra.mxu0 %v37
  %1549 = vmatprep.subr.mxu0 0.0
  %1550 = vmatpush1.msra.mxu0 %v38
  %1551 = vmatprep.subr.mxu0 0.0
  %1552 = vmatpush1.msra.mxu0 %v39
  %1553 = vmatprep.subr.mxu0 0.0
  %1554 = vmatpush1.msra.mxu0 %v40
  %1555 = vmatprep.subr.mxu0 0.0
  %1556 = vmatpush1.msra.mxu0 %v41
  %1557 = vmatprep.subr.mxu0 0.0
  %1558 = vmatpush1.msra.mxu0 %v42
  %1559 = vmatprep.subr.mxu0 0.0
  %1560 = vmatpush1.msra.mxu0 0.0
  %1561 = vmatprep.subr.mxu0 0.0
  %1562 = vmatpush1.msra.mxu0 0.0
  %1563 = vmatprep.subr.mxu0 0.0
  %1564 = vmatpush1.msra.mxu0 0.0
  %1565 = vmatprep.subr.mxu0 0.0
  %1566 = vmatpush1.msra.mxu0 0.0
  %1567 = vmatprep.subr.mxu0 0.0
  %1568 = vmatpush1.msra.mxu0 0.0
  %1569 = vmatprep.subr.mxu0 0.0
  %1570 = vmatpush1.msra.mxu0 0.0
  %1571 = vmatprep.subr.mxu0 0.0
  %1572 = vmatpush1.msra.mxu0 0.0
  %1573 = vmatprep.subr.mxu0 0.0
  %1574 = vmatpush1.msra.mxu0 0.0
  %1575 = vmatprep.subr.mxu0 0.0
  %1576 = vmatpush1.msra.mxu0 0.0
  %1577 = vmatprep.subr.mxu0 0.0
  %1578 = vmatpush1.msra.mxu0 0.0
  %1579 = vmatprep.subr.mxu0 0.0
  %1580 = vmatpush1.msra.mxu0 0.0
  %1581 = vmatprep.subr.mxu0 0.0
  %1582 = vmatpush1.msra.mxu0 0.0
  %1583 = vmatprep.subr.mxu0 0.0
  %1584 = vmatpush1.msra.mxu0 0.0
  %1585 = vmatprep.subr.mxu0 0.0
  %1586 = vmatpush1.msra.mxu0 0.0
  %1587 = vmatprep.subr.mxu0 0.0
  %1588 = vmatpush1.msra.mxu0 0.0
  %1589 = vmatprep.subr.mxu0 0.0
  %1590 = vmatpush1.msra.mxu0 0.0
  %1591 = vmatprep.subr.mxu0 0.0
  %1592 = vmatpush1.msra.mxu0 0.0
  %1593 = vmatprep.subr.mxu0 0.0
  %1594 = vmatpush1.msra.mxu0 0.0
  %1595 = vmatprep.subr.mxu0 0.0
  %1596 = vmatpush1.msra.mxu0 0.0
  %1597 = vmatprep.subr.mxu0 0.0
  %1598 = vmatpush1.msra.mxu0 0.0
  %1599 = vmatprep.subr.mxu0 0.0
  %1600 = vmatpush1.msra.mxu0 0.0
  %1601 = vmatprep.subr.mxu0 0.0
  %1602 = vmatpush1.msra.mxu0 0.0
  %1603 = vmatprep.subr.mxu0 0.0
  %1604 = vmatpush1.msra.mxu0 0.0
  %1605 = vmatprep.subr.mxu0 0.0
  %1606 = vmatpush1.msra.mxu0 0.0
  %1607 = vmatprep.mubr.f32.mxu0 0.0
  %1608 = vmatmul.mubr.f32.gmra.mrb[0].mxu0 %v1541
  %v1609 = vpop.f32.mrb[0].mxu0
  %v1610 = vadd.f32 %v48, %v1609
  %v1611 = vpop.f32.mrb[0].mxu0
  %1612 = vdwg.mxu0
  %v1613 = vsub.f32 0.0, %v1610
  %v1614 = vmul.f32 %v1613, 1.442695
  %v1615 = vpow.pop %v1614
  %v1616 = vadd.f32 %v1615, 1.0
  %v1617 = vrcp.pop %v1616
  %v1618 = vmul.f32 1.0, %v1617
  %v1619 = vtanh.pop %v1610
  %v1620 = vmul.f32 %v1618, %v1425
  %1622 = vrot.lane.b32.xlu0 %v1619, 64
  %v1623 = vpop.permute.xlu0 %1622
  %v1625 = vmul.f32 %v1618, %v1623
  %1627 = vrot.lane.b32.xlu0 %v1625, 32
  %v1628 = vpop.permute.xlu0 %1627
  %v1630 = vadd.f32 %v1620, %v1628
  %v1631 = vtanh.pop %v1630
  %1633 = vrot.lane.b32.xlu0 %v1631, 64
  %v1634 = vpop.permute.xlu0 %1633
  %v1636 = vmul.f32 %v1618, %v1634
  %s1637 = scalar_lea.vmem [#allocation2], 56
  %v1638 = vld [vmem:[%s1637] sm:$0xff]
  %v1639 = vsel %vm205, %v1533, 0
  %1641 = vmatprep.subr.mxu0 0.0
  %1642 = vmatpush1.msra.mxu0 %v31
  %1643 = vmatprep.subr.mxu0 0.0
  %1644 = vmatpush1.msra.mxu0 %v32
  %1645 = vmatprep.subr.mxu0 0.0
  %1646 = vmatpush1.msra.mxu0 %v33
  %1647 = vmatprep.subr.mxu0 0.0
  %1648 = vmatpush1.msra.mxu0 %v34
  %1649 = vmatprep.subr.mxu0 0.0
  %1650 = vmatpush1.msra.mxu0 0.0
  %1651 = vmatprep.subr.mxu0 0.0
  %1652 = vmatpush1.msra.mxu0 0.0
  %1653 = vmatprep.subr.mxu0 0.0
  %1654 = vmatpush1.msra.mxu0 0.0
  %1655 = vmatprep.subr.mxu0 0.0
  %1656 = vmatpush1.msra.mxu0 0.0
  %1657 = vmatprep.subr.mxu0 0.0
  %1658 = vmatpush1.msra.mxu0 0.0
  %1659 = vmatprep.subr.mxu0 0.0
  %1660 = vmatpush1.msra.mxu0 0.0
  %1661 = vmatprep.subr.mxu0 0.0
  %1662 = vmatpush1.msra.mxu0 0.0
  %1663 = vmatprep.subr.mxu0 0.0
  %1664 = vmatpush1.msra.mxu0 0.0
  %1665 = vmatprep.subr.mxu0 0.0
  %1666 = vmatpush1.msra.mxu0 0.0
  %1667 = vmatprep.subr.mxu0 0.0
  %1668 = vmatpush1.msra.mxu0 0.0
  %1669 = vmatprep.subr.mxu0 0.0
  %1670 = vmatpush1.msra.mxu0 0.0
  %1671 = vmatprep.subr.mxu0 0.0
  %1672 = vmatpush1.msra.mxu0 0.0
  %1673 = vmatprep.subr.mxu0 0.0
  %1674 = vmatpush1.msra.mxu0 0.0
  %1675 = vmatprep.subr.mxu0 0.0
  %1676 = vmatpush1.msra.mxu0 0.0
  %1677 = vmatprep.subr.mxu0 0.0
  %1678 = vmatpush1.msra.mxu0 0.0
  %1679 = vmatprep.subr.mxu0 0.0
  %1680 = vmatpush1.msra.mxu0 0.0
  %1681 = vmatprep.subr.mxu0 0.0
  %1682 = vmatpush1.msra.mxu0 0.0
  %1683 = vmatprep.subr.mxu0 0.0
  %1684 = vmatpush1.msra.mxu0 0.0
  %1685 = vmatprep.subr.mxu0 0.0
  %1686 = vmatpush1.msra.mxu0 0.0
  %1687 = vmatprep.subr.mxu0 0.0
  %1688 = vmatpush1.msra.mxu0 0.0
  %1689 = vmatprep.subr.mxu0 0.0
  %1690 = vmatpush1.msra.mxu0 0.0
  %1691 = vmatprep.subr.mxu0 0.0
  %1692 = vmatpush1.msra.mxu0 0.0
  %1693 = vmatprep.subr.mxu0 0.0
  %1694 = vmatpush1.msra.mxu0 0.0
  %1695 = vmatprep.subr.mxu0 0.0
  %1696 = vmatpush1.msra.mxu0 0.0
  %1697 = vmatprep.subr.mxu0 0.0
  %1698 = vmatpush1.msra.mxu0 0.0
  %1699 = vmatprep.subr.mxu0 0.0
  %1700 = vmatpush1.msra.mxu0 0.0
  %1701 = vmatprep.subr.mxu0 0.0
  %1702 = vmatpush1.msra.mxu0 0.0
  %1703 = vmatprep.subr.mxu0 0.0
  %1704 = vmatpush1.msra.mxu0 0.0
  %1705 = vmatprep.mubr.f32.mxu0 0.0
  %1706 = vmatmul.mubr.f32.gmra.mrb[0].mxu0 %v1639
  %v1707 = vpop.f32.mrb[0].mxu0
  %v1708 = vadd.f32 0.0, %v1707
  %v1709 = vpop.f32.mrb[0].mxu0
  %1710 = vdwg.mxu0
  %v1711 = vadd.f32 %v1638, %v1708
  %v1712 = vsub.f32 0.0, %v1711
  %v1713 = vmul.f32 %v1712, 1.442695
  %v1714 = vpow.pop %v1713
  %v1715 = vadd.f32 %v1714, 1.0
  %v1716 = vrcp.pop %v1715
  %v1717 = vmul.f32 1.0, %v1716
  %v1718 = vtanh.pop %v1711
  %v1719 = vmul.f32 %v1717, %v1524
  %1721 = vrot.lane.b32.xlu0 %v1718, 64
  %v1722 = vpop.permute.xlu0 %1721
  %v1724 = vmul.f32 %v1717, %v1722
  %1726 = vrot.lane.b32.xlu0 %v1724, 32
  %v1727 = vpop.permute.xlu0 %1726
  %v1729 = vadd.f32 %v1719, %v1727
  %v1730 = vtanh.pop %v1729
  %1732 = vrot.lane.b32.xlu0 %v1730, 64
  %v1733 = vpop.permute.xlu0 %1732
  %v1735 = vmul.f32 %v1717, %v1733
  %1737 = vrot.lane.b32.xlu0 %v1735, 32
  %v1738 = vpop.permute.xlu0 %1737
  %1741 = vrot.lane.b32.xlu0 %v1636, 64
  %v1742 = vpop.permute.xlu0 %1741
  %v1744 = vsel %vm205, %v1738, %v1742
  %v1746 = vsel %vm309, %v1744, 0
  %1748 = vmatprep.subr.mxu0 0.0
  %1749 = vmatpush1.msra.mxu0 %v35
  %1750 = vmatprep.subr.mxu0 0.0
  %1751 = vmatpush1.msra.mxu0 %v36
  %1752 = vmatprep.subr.mxu0 0.0
  %1753 = vmatpush1.msra.mxu0 %v37
  %1754 = vmatprep.subr.mxu0 0.0
  %1755 = vmatpush1.msra.mxu0 %v38
  %1756 = vmatprep.subr.mxu0 0.0
  %1757 = vmatpush1.msra.mxu0 %v39
  %1758 = vmatprep.subr.mxu0 0.0
  %1759 = vmatpush1.msra.mxu0 %v40
  %1760 = vmatprep.subr.mxu0 0.0
  %1761 = vmatpush1.msra.mxu0 %v41
  %1762 = vmatprep.subr.mxu0 0.0
  %1763 = vmatpush1.msra.mxu0 %v42
  %1764 = vmatprep.subr.mxu0 0.0
  %1765 = vmatpush1.msra.mxu0 0.0
  %1766 = vmatprep.subr.mxu0 0.0
  %1767 = vmatpush1.msra.mxu0 0.0
  %1768 = vmatprep.subr.mxu0 0.0
  %1769 = vmatpush1.msra.mxu0 0.0
  %1770 = vmatprep.subr.mxu0 0.0
  %1771 = vmatpush1.msra.mxu0 0.0
  %1772 = vmatprep.subr.mxu0 0.0
  %1773 = vmatpush1.msra.mxu0 0.0
  %1774 = vmatprep.subr.mxu0 0.0
  %1775 = vmatpush1.msra.mxu0 0.0
  %1776 = vmatprep.subr.mxu0 0.0
  %1777 = vmatpush1.msra.mxu0 0.0
  %1778 = vmatprep.subr.mxu0 0.0
  %1779 = vmatpush1.msra.mxu0 0.0
  %1780 = vmatprep.subr.mxu0 0.0
  %1781 = vmatpush1.msra.mxu0 0.0
  %1782 = vmatprep.subr.mxu0 0.0
  %1783 = vmatpush1.msra.mxu0 0.0
  %1784 = vmatprep.subr.mxu0 0.0
  %1785 = vmatpush1.msra.mxu0 0.0
  %1786 = vmatprep.subr.mxu0 0.0
  %1787 = vmatpush1.msra.mxu0 0.0
  %1788 = vmatprep.subr.mxu0 0.0
  %1789 = vmatpush1.msra.mxu0 0.0
  %1790 = vmatprep.subr.mxu0 0.0
  %1791 = vmatpush1.msra.mxu0 0.0
  %1792 = vmatprep.subr.mxu0 0.0
  %1793 = vmatpush1.msra.mxu0 0.0
  %1794 = vmatprep.subr.mxu0 0.0
  %1795 = vmatpush1.msra.mxu0 0.0
  %1796 = vmatprep.subr.mxu0 0.0
  %1797 = vmatpush1.msra.mxu0 0.0
  %1798 = vmatprep.subr.mxu0 0.0
  %1799 = vmatpush1.msra.mxu0 0.0
  %1800 = vmatprep.subr.mxu0 0.0
  %1801 = vmatpush1.msra.mxu0 0.0
  %1802 = vmatprep.subr.mxu0 0.0
  %1803 = vmatpush1.msra.mxu0 0.0
  %1804 = vmatprep.subr.mxu0 0.0
  %1805 = vmatpush1.msra.mxu0 0.0
  %1806 = vmatprep.subr.mxu0 0.0
  %1807 = vmatpush1.msra.mxu0 0.0
  %1808 = vmatprep.subr.mxu0 0.0
  %1809 = vmatpush1.msra.mxu0 0.0
  %1810 = vmatprep.subr.mxu0 0.0
  %1811 = vmatpush1.msra.mxu0 0.0
  %1812 = vmatprep.mubr.f32.mxu0 0.0
  %1813 = vmatmul.mubr.f32.gmra.mrb[0].mxu0 %v1746
  %v1814 = vpop.f32.mrb[0].mxu0
  %v1815 = vadd.f32 %v48, %v1814
  %v1816 = vpop.f32.mrb[0].mxu0
  %1817 = vdwg.mxu0
  %v1818 = vsub.f32 0.0, %v1815
  %v1819 = vmul.f32 %v1818, 1.442695
  %v1820 = vpow.pop %v1819
  %v1821 = vadd.f32 %v1820, 1.0
  %v1822 = vrcp.pop %v1821
  %v1823 = vmul.f32 1.0, %v1822
  %v1824 = vtanh.pop %v1815
  %v1825 = vmul.f32 %v1823, %v1630
  %1827 = vrot.lane.b32.xlu0 %v1824, 64
  %v1828 = vpop.permute.xlu0 %1827
  %v1830 = vmul.f32 %v1823, %v1828
  %1832 = vrot.lane.b32.xlu0 %v1830, 32
  %v1833 = vpop.permute.xlu0 %1832
  %v1835 = vadd.f32 %v1825, %v1833
  %v1836 = vtanh.pop %v1835
  %1838 = vrot.lane.b32.xlu0 %v1836, 64
  %v1839 = vpop.permute.xlu0 %1838
  %v1841 = vmul.f32 %v1823, %v1839
  %v1842 = vld [vmem:[%s6] sm:$0x1]
  %v1844 = vlaneseq
  %v1845 = vshrl.u32 %v1844, 7
  %v1846 = vsub.s32 0, %v1845
  %v1847 = vrot.slane %v1842, %v1846
  %1848 = vrot.lane.b32.xlu0 %v1847, 96
  %v1849 = vpop.permute.xlu0 %1848
  %v1851 = vmul.f32 %v1841, %v1849
  %1853 = vrot.lane.b32.xlu0 %v1851, 32
  %v1854 = vpop.permute.xlu0 %1853
  %v1856 = vsel %vm205, %v1854, 0.0
  %1857 = vadd.xlane.f32.xlu0 %v1856
  %v1858 = vpop.xlane.xlu0 %1857
  %v1859 = vld [vmem:[#allocation3] sm:$0x1]
  %v1861 = vlaneseq
  %v1862 = vshrl.u32 %v1861, 7
  %v1863 = vsub.s32 0, %v1862
  %v1864 = vrot.slane %v1859, %v1863
  %v1866 = vadd.f32 %v1858, %v1864
  %vm1867 = vcmask 7168
  %1868 = vst.msk [vmem:[%s8] sm:$0xff] %vm1867, %v1866
  // Predicated region
  $region34: #{lstm_predictor_forward.1} parent=0 // pred_check
    _
  $region35: #{lstm_predictor_forward.1} parent=0 // pred_check_branch
    %1870 = sbr.rel (0) target = $region37
  $region36: #{lstm_predictor_forward.1} parent=0 // pred_region
    _
  $region37: #{lstm_predictor_forward.1} parent=0 // pred_fallthru
    _
  // Predicated region
  $region38: #{lstm_predictor_forward.1} parent=0 // pred_check
    _
  $region39: #{lstm_predictor_forward.1} parent=0 // pred_check_branch
    %1872 = sbr.rel (0) target = $region41
  $region40: #{lstm_predictor_forward.1} parent=0 // pred_region
    _
  $region41: #{lstm_predictor_forward.1} parent=0 // pred_fallthru
    _

</llo_original>
